<compile_context>
chip_gen: v7x
topology: tpu7x:2x2x1
jax: 0.10.0
libtpu: 0.0.40
codegen_flags: <defaults>
</compile_context>

<pallas_src>
import functools

import numpy as np
import jax
import jax.numpy as jnp
from jax.experimental import pallas as pl
from jax.experimental.pallas import tpu as pltpu


# ----------------------------------------------------------------------------
# Host-side helpers
# ----------------------------------------------------------------------------
def _tap_masks(H, W):
    """(9, H*W) f32 validity masks for the 3x3 taps (padding=1)."""
    n = np.arange(H * W)
    row, col = n // W, n % W
    masks = []
    for di in (-1, 0, 1):
        for dj in (-1, 0, 1):
            ok = ((row + di >= 0) & (row + di < H) &
                  (col + dj >= 0) & (col + dj < W))
            masks.append(ok.astype(np.float32))
    return jnp.asarray(np.stack(masks))          # (9, H*W)


def _k1_vmem_estimate(ct, cin, n):
    # double-buffered blocks + f32 intermediates (qkv / rolled / acc headroom)
    blocks = ct * cin * 2 + ct * 9 * 4 + 9 * n * 4 + cin * n * 2 + ct * n * 2
    return 2 * blocks + 4 * ct * n * 4


def _pick_channel_tile(cout, cin, n, target=256, budget=40 << 20):
    """Largest 16-aligned divisor of cout <= target whose VMEM estimate fits."""
    divs = [t for t in range(16, min(cout, target) + 1, 16) if cout % t == 0]
    if not divs:
        return cout                      # ragged Cout: single full block
    fitting = [t for t in divs if _k1_vmem_estimate(t, cin, n) <= budget]
    return max(fitting) if fitting else min(divs)


def _vmem_limit(estimate):
    # >= default scoped limit, <= physical VMEM of the smallest chip (v7x: 64 MiB)
    return int(min(max(estimate + (4 << 20), 32 << 20), 64 << 20))


# ----------------------------------------------------------------------------
# Kernel 1: fused qkv 1x1 conv + depthwise 3x3 conv (output-channel tiled)
# ----------------------------------------------------------------------------
def _make_qkv_dw_kernel(H, W):
    N = H * W

    def kernel(w_qkv_ref, w_dw_ref, mask_ref, x_ref, o_ref):
        # w_qkv_ref: (CT, Cin) bf16   w_dw_ref: (CT, 9) f32
        # mask_ref : (9, N)   f32     x_ref   : (Cin, N) bf16   o_ref: (CT, N) bf16
        qkv = jnp.dot(w_qkv_ref[...], x_ref[...],
                      preferred_element_type=jnp.float32)        # (CT, N) f32

        wdw = w_dw_ref[...]                                      # (CT, 9)
        mask = mask_ref[...]                                     # (9,  N)

        # Depthwise 3x3 (padding=1): 9 taps = XLU lane-rolls + masked VPU MACs.
        # The masks zero every out-of-image position, so wrapped values from
        # the roll never contribute.
        acc = wdw[:, 4:5] * qkv                  # centre tap: mask is all-ones
        t = 0
        for di in (-1, 0, 1):
            for dj in (-1, 0, 1):
                if di == 0 and dj == 0:
                    t += 1
                    continue
                delta = di * W + dj
                # rolled[:, n] == qkv[:, (n + delta) mod N]
                rolled = pltpu.roll(qkv, shift=(-delta) % N, axis=1)
                acc = acc + wdw[:, t:t + 1] * (rolled * mask[t:t + 1, :])
                t += 1
        o_ref[...] = acc.astype(o_ref.dtype)

    return kernel


def qkv_dwconv(x_bf16, w_qkv_bf16, w_dw9, masks, H, W):
    # x_bf16: (B, Cin, N) bf16, w_qkv_bf16: (3C, Cin) bf16, w_dw9: (3C, 9) f32
    B, Cin, N = x_bf16.shape
    Cout = w_qkv_bf16.shape[0]
    ct = _pick_channel_tile(Cout, Cin, N)
    kernel = _make_qkv_dw_kernel(H, W)
    return pl.pallas_call(
        kernel,
        out_shape=jax.ShapeDtypeStruct((B, Cout, N), jnp.bfloat16),
        grid=(B, Cout // ct),
        in_specs=[
            pl.BlockSpec((ct, Cin), lambda b, c: (c, 0)),
            pl.BlockSpec((ct, 9), lambda b, c: (c, 0)),
            pl.BlockSpec((9, N), lambda b, c: (0, 0)),             # VMEM-resident
            pl.BlockSpec((None, Cin, N), lambda b, c: (b, 0, 0)),  # resident / batch
        ],
        out_specs=pl.BlockSpec((None, ct, N), lambda b, c: (b, c, 0)),
        compiler_params=pltpu.CompilerParams(
            dimension_semantics=("parallel", "parallel"),
            vmem_limit_bytes=_vmem_limit(_k1_vmem_estimate(ct, Cin, N))),
    )(w_qkv_bf16, w_dw9, masks, x_bf16)


# ----------------------------------------------------------------------------
# Kernel 2: fused per-batch channel attention (block-diagonal) + project_out
# ----------------------------------------------------------------------------
def _make_attn_proj_kernel(C):
    eps2 = 1e-24   # F.normalize eps = 1e-12, squared

    def kernel(temp_ref, bias_ref, w_proj_ref, qkv_ref, o_ref):
        # temp_ref: (C,1) f32  bias_ref: (C,C) f32  w_proj_ref: (C,C) bf16
        # qkv_ref : (3C,N) bf16                     o_ref: (C,N) f32
        q = qkv_ref[0:C, :].astype(jnp.float32)
        k = qkv_ref[C:2 * C, :].astype(jnp.float32)
        v = qkv_ref[2 * C:3 * C, :]                       # stays bf16 for MXU

        # Per-row (= per head-channel) L2 normalisation over N; temperature is
        # folded into q's row scale so the gram needs no extra scaling pass.
        q_scl = jax.lax.rsqrt(jnp.maximum(jnp.sum(q * q, -1, keepdims=True), eps2))
        k_scl = jax.lax.rsqrt(jnp.maximum(jnp.sum(k * k, -1, keepdims=True), eps2))
        qn = (q * (q_scl * temp_ref[...])).astype(jnp.bfloat16)
        kn = (k * k_scl).astype(jnp.bfloat16)

        # Block-diagonal (C,C) gram: off-diagonal head blocks are biased to
        # -1e30 so the row softmax reproduces num_heads independent softmaxes.
        s = jax.lax.dot_general(qn, kn, (((1,), (1,)), ((), ())),
                                preferred_element_type=jnp.float32) + bias_ref[...]
        s = s - jnp.max(s, axis=-1, keepdims=True)
        p = jnp.exp(s)
        p = p * pl.reciprocal(jnp.sum(p, axis=-1, keepdims=True), approx=True)

        av = jnp.dot(p.astype(jnp.bfloat16), v, preferred_element_type=jnp.float32)
        # project_out 1x1 conv fused in (bf16 MXU, f32 accumulate + writeback).
        o_ref[...] = jnp.dot(w_proj_ref[...], av.astype(jnp.bfloat16),
                             preferred_element_type=jnp.float32).astype(o_ref.dtype)

    return kernel


def attention_project(qkv, temperature, w_proj_bf16, num_heads):
    # qkv: (B, 3C, N) bf16, temperature: (1, num_heads, 1, 1) f32, w_proj: (C, C) bf16
    B, C3, N = qkv.shape
    C = C3 // 3
    head_dim = C // num_heads
    head_id = np.arange(C) // head_dim
    bias = jnp.asarray(np.where(head_id[:, None] == head_id[None, :],
                                0.0, -1e30).astype(np.float32))          # (C, C)
    temp_row = temperature.reshape(num_heads)[head_id].reshape(C, 1)     # (C, 1)

    est = (2 * (C * 4 + C * C * 4 + C * C * 2 + 3 * C * N * 2 + C * N * 4)
           + 6 * C * N * 4 + 4 * C * C * 4)
    kernel = _make_attn_proj_kernel(C)
    return pl.pallas_call(
        kernel,
        out_shape=jax.ShapeDtypeStruct((B, C, N), jnp.float32),
        grid=(B,),
        in_specs=[
            pl.BlockSpec((C, 1), lambda b: (0, 0)),                 # temp per row
            pl.BlockSpec((C, C), lambda b: (0, 0)),                 # head-block bias
            pl.BlockSpec((C, C), lambda b: (0, 0)),                 # w_proj bf16
            pl.BlockSpec((None, 3 * C, N), lambda b: (b, 0, 0)),    # qkv, one stream
        ],
        out_specs=pl.BlockSpec((None, C, N), lambda b: (b, 0, 0)),
        compiler_params=pltpu.CompilerParams(
            dimension_semantics=("parallel",),
            vmem_limit_bytes=_vmem_limit(est)),
    )(temp_row, bias, w_proj_bf16, qkv)


# ----------------------------------------------------------------------------
# Full forward pass (glue is free reshapes/casts only; compute in the kernels)
# ----------------------------------------------------------------------------
def mha_forward(x, params, num_heads):
    B, C, H, W = x.shape
    N = H * W
    masks = _tap_masks(H, W)
    # bf16 at the kernel boundary: halves HBM traffic of the biggest tensors
    # and feeds the MXU its native dtype.
    x_bf = x.reshape(B, C, N).astype(jnp.bfloat16)
    w_qkv_bf = params["w_qkv"].astype(jnp.bfloat16)
    w_proj_bf = params["w_proj"].astype(jnp.bfloat16)
    # TODO(synk): pad N up to a multiple of 128 (and extend the masks) for
    #   ragged H*W; full-dim blocks stay correct but store lane-sparse.
    qkv = qkv_dwconv(x_bf, w_qkv_bf, params["w_dw"].reshape(3 * C, 9),
                     masks, H, W)                                 # (B,3C,N) bf16
    out = attention_project(qkv, params["temperature"], w_proj_bf,
                            num_heads)                            # (B,C,N) f32
    return out.reshape(B, C, H, W)


# ----------------------------------------------------------------------------
# Pure-JAX f32 reference (verification only)
# ----------------------------------------------------------------------------
def mha_reference(x, params, num_heads):
    B, C, H, W = x.shape
    N = H * W
    D = C // num_heads

    qkv = jnp.einsum("oc,bcn->bon", params["w_qkv"], x.reshape(B, C, N))
    qkv = qkv.reshape(B, 3 * C, H, W)
    xp = jnp.pad(qkv, ((0, 0), (0, 0), (1, 1), (1, 1)))
    acc = jnp.zeros_like(qkv)
    for di in range(3):
        for dj in range(3):
            acc = acc + xp[:, :, di:di + H, dj:dj + W] * \
                params["w_dw"][None, :, di, dj, None, None]

    q, k, v = jnp.split(acc.reshape(B, 3 * C, N), 3, axis=1)
    q = q.reshape(B, num_heads, D, N)
    k = k.reshape(B, num_heads, D, N)
    v = v.reshape(B, num_heads, D, N)

    qn = q / jnp.maximum(jnp.sqrt(jnp.sum(q * q, -1, keepdims=True)), 1e-12)
    kn = k / jnp.maximum(jnp.sqrt(jnp.sum(k * k, -1, keepdims=True)), 1e-12)
    s = jnp.einsum("bhdn,bhen->bhde", qn, kn) * \
        params["temperature"].reshape(1, num_heads, 1, 1)
    p = jax.nn.softmax(s, axis=-1)
    o = jnp.einsum("bhde,bhen->bhdn", p, v).reshape(B, C, N)
    o = jnp.einsum("oc,bcn->bon", params["w_proj"], o)
    return o.reshape(B, C, H, W)


# ----------------------------------------------------------------------------
if __name__ == "__main__":
    B, C, H, W = 2, 32, 16, 16
    NUM_HEADS = 4

    key = jax.random.PRNGKey(0)
    kx, kq, kd, kp = jax.random.split(key, 4)

    x = jax.random.normal(kx, (B, C, H, W), jnp.float32)

    params = {
        # Conv2d(C, 3C, 1, bias=False)  -> weight (3C, C, 1, 1) squeezed to (3C, C)
        "w_qkv": 0.1 * jax.random.normal(kq, (3 * C, C), jnp.float32),
        # Conv2d(3C, 3C, 3, groups=3C)  -> weight (3C, 1, 3, 3) squeezed to (3C, 3, 3)
        "w_dw": 0.1 * jax.random.normal(kd, (3 * C, 3, 3), jnp.float32),
        # Conv2d(C, C, 1, bias=False)   -> weight (C, C)
        "w_proj": 0.1 * jax.random.normal(kp, (C, C), jnp.float32),
        # nn.Parameter(torch.ones(1, H, 1, 1)); non-trivial deterministic values
        "temperature": (1.0 + 0.25 * jnp.arange(NUM_HEADS, dtype=jnp.float32)
                        ).reshape(1, NUM_HEADS, 1, 1),
    }

    fwd = jax.jit(functools.partial(mha_forward, num_heads=NUM_HEADS))
    out = jax.block_until_ready(fwd(x, params))
    ref = jax.block_until_ready(mha_reference(x, params, NUM_HEADS))

    assert out.shape == (B, C, H, W)
    err = float(jnp.max(jnp.abs(out - ref)))
    # bf16 activations + bf16 MXU operands throughout -> loosened tolerance.
    assert jnp.allclose(out, ref, atol=3e-2, rtol=3e-2), f"max abs err {err}"

    print("KERNEL_OK")
</pallas_src>

<mosaic_0001>
module attributes {stable_mosaic.version = 11 : i64} {
  func.func @kernel(%arg0: i32, %arg1: i32, %arg2: memref<96x32xbf16, #tpu.memory_space<vmem>>, %arg3: memref<96x9xf32, #tpu.memory_space<vmem>>, %arg4: memref<9x256xf32, #tpu.memory_space<vmem>>, %arg5: memref<1x32x256xbf16, #tpu.memory_space<vmem>>, %arg6: memref<1x96x256xbf16, #tpu.memory_space<vmem>>) attributes {dimension_semantics = [#tpu.dimension_semantics<parallel>, #tpu.dimension_semantics<parallel>], iteration_bounds = array<i64: 2, 1>, scalar_prefetch = 0 : i64, scratch_operands = 0 : i64, tpu.core_type = #tpu.core_type<tc>, window_params = [{transform_indices = @transform_0, window_bounds = array<i64: 96, 32>}, {transform_indices = @transform_1, window_bounds = array<i64: 96, 9>}, {pipeline_mode = #tpu.pipeline_mode<synchronous>, transform_indices = @transform_2, window_bounds = array<i64: 9, 256>}, {transform_indices = @transform_3, window_bounds = array<i64: 1, 32, 256>}, {transform_indices = @transform_4, window_bounds = array<i64: 1, 96, 256>}]} {
    %c0 = arith.constant 0 : index
    %c0_0 = arith.constant 0 : index
    %0 = vector.load %arg2[%c0, %c0_0] : memref<96x32xbf16, #tpu.memory_space<vmem>>, vector<96x32xbf16>
    %c0_1 = arith.constant 0 : index
    %c0_2 = arith.constant 0 : index
    %c0_3 = arith.constant 0 : index
    %1 = vector.load %arg5[%c0_1, %c0_2, %c0_3] : memref<1x32x256xbf16, #tpu.memory_space<vmem>>, vector<1x32x256xbf16>
    %2 = vector.shape_cast %1 : vector<1x32x256xbf16> to vector<32x256xbf16>
    %cst = arith.constant dense<0.000000e+00> : vector<96x256xf32>
    %3 = tpu.matmul %0, %2, %cst {dimension_numbers = #tpu.dot_dimension_numbers<[1], [0], [0], [1], [0, 0, 1, 1], [], []>} : vector<96x32xbf16>, vector<32x256xbf16>, vector<96x256xf32> -> vector<96x256xf32>
    %c0_4 = arith.constant 0 : index
    %c0_5 = arith.constant 0 : index
    %4 = vector.load %arg3[%c0_4, %c0_5] : memref<96x9xf32, #tpu.memory_space<vmem>>, vector<96x9xf32>
    %c0_6 = arith.constant 0 : index
    %c0_7 = arith.constant 0 : index
    %5 = vector.load %arg4[%c0_6, %c0_7] : memref<9x256xf32, #tpu.memory_space<vmem>>, vector<9x256xf32>
    %6 = vector.extract_strided_slice %4 {offsets = [0, 4], sizes = [96, 1], strides = [1, 1]} : vector<96x9xf32> to vector<96x1xf32>
    %7 = vector.broadcast %6 : vector<96x1xf32> to vector<96x256xf32>
    %8 = arith.mulf %7, %3 : vector<96x256xf32>
    %c17_i32 = arith.constant 17 : i32
    %9 = tpu.dynamic_rotate %3 by %c17_i32 dim 1 : vector<96x256xf32>, i32 -> vector<96x256xf32>
    %10 = vector.extract_strided_slice %4 {offsets = [0, 0], sizes = [96, 1], strides = [1, 1]} : vector<96x9xf32> to vector<96x1xf32>
    %11 = vector.extract_strided_slice %5 {offsets = [0, 0], sizes = [1, 256], strides = [1, 1]} : vector<9x256xf32> to vector<1x256xf32>
    %12 = vector.broadcast %11 : vector<1x256xf32> to vector<96x256xf32>
    %13 = arith.mulf %9, %12 : vector<96x256xf32>
    %14 = vector.broadcast %10 : vector<96x1xf32> to vector<96x256xf32>
    %15 = arith.mulf %14, %13 : vector<96x256xf32>
    %16 = arith.addf %8, %15 : vector<96x256xf32>
    %c16_i32 = arith.constant 16 : i32
    %17 = tpu.dynamic_rotate %3 by %c16_i32 dim 1 : vector<96x256xf32>, i32 -> vector<96x256xf32>
    %18 = vector.extract_strided_slice %4 {offsets = [0, 1], sizes = [96, 1], strides = [1, 1]} : vector<96x9xf32> to vector<96x1xf32>
    %19 = vector.extract_strided_slice %5 {offsets = [1, 0], sizes = [1, 256], strides = [1, 1]} : vector<9x256xf32> to vector<1x256xf32>
    %20 = vector.broadcast %19 : vector<1x256xf32> to vector<96x256xf32>
    %21 = arith.mulf %17, %20 : vector<96x256xf32>
    %22 = vector.broadcast %18 : vector<96x1xf32> to vector<96x256xf32>
    %23 = arith.mulf %22, %21 : vector<96x256xf32>
    %24 = arith.addf %16, %23 : vector<96x256xf32>
    %c15_i32 = arith.constant 15 : i32
    %25 = tpu.dynamic_rotate %3 by %c15_i32 dim 1 : vector<96x256xf32>, i32 -> vector<96x256xf32>
    %26 = vector.extract_strided_slice %4 {offsets = [0, 2], sizes = [96, 1], strides = [1, 1]} : vector<96x9xf32> to vector<96x1xf32>
    %27 = vector.extract_strided_slice %5 {offsets = [2, 0], sizes = [1, 256], strides = [1, 1]} : vector<9x256xf32> to vector<1x256xf32>
    %28 = vector.broadcast %27 : vector<1x256xf32> to vector<96x256xf32>
    %29 = arith.mulf %25, %28 : vector<96x256xf32>
    %30 = vector.broadcast %26 : vector<96x1xf32> to vector<96x256xf32>
    %31 = arith.mulf %30, %29 : vector<96x256xf32>
    %32 = arith.addf %24, %31 : vector<96x256xf32>
    %c1_i32 = arith.constant 1 : i32
    %33 = tpu.dynamic_rotate %3 by %c1_i32 dim 1 : vector<96x256xf32>, i32 -> vector<96x256xf32>
    %34 = vector.extract_strided_slice %4 {offsets = [0, 3], sizes = [96, 1], strides = [1, 1]} : vector<96x9xf32> to vector<96x1xf32>
    %35 = vector.extract_strided_slice %5 {offsets = [3, 0], sizes = [1, 256], strides = [1, 1]} : vector<9x256xf32> to vector<1x256xf32>
    %36 = vector.broadcast %35 : vector<1x256xf32> to vector<96x256xf32>
    %37 = arith.mulf %33, %36 : vector<96x256xf32>
    %38 = vector.broadcast %34 : vector<96x1xf32> to vector<96x256xf32>
    %39 = arith.mulf %38, %37 : vector<96x256xf32>
    %40 = arith.addf %32, %39 : vector<96x256xf32>
    %c255_i32 = arith.constant 255 : i32
    %41 = tpu.dynamic_rotate %3 by %c255_i32 dim 1 : vector<96x256xf32>, i32 -> vector<96x256xf32>
    %42 = vector.extract_strided_slice %4 {offsets = [0, 5], sizes = [96, 1], strides = [1, 1]} : vector<96x9xf32> to vector<96x1xf32>
    %43 = vector.extract_strided_slice %5 {offsets = [5, 0], sizes = [1, 256], strides = [1, 1]} : vector<9x256xf32> to vector<1x256xf32>
    %44 = vector.broadcast %43 : vector<1x256xf32> to vector<96x256xf32>
    %45 = arith.mulf %41, %44 : vector<96x256xf32>
    %46 = vector.broadcast %42 : vector<96x1xf32> to vector<96x256xf32>
    %47 = arith.mulf %46, %45 : vector<96x256xf32>
    %48 = arith.addf %40, %47 : vector<96x256xf32>
    %c241_i32 = arith.constant 241 : i32
    %49 = tpu.dynamic_rotate %3 by %c241_i32 dim 1 : vector<96x256xf32>, i32 -> vector<96x256xf32>
    %50 = vector.extract_strided_slice %4 {offsets = [0, 6], sizes = [96, 1], strides = [1, 1]} : vector<96x9xf32> to vector<96x1xf32>
    %51 = vector.extract_strided_slice %5 {offsets = [6, 0], sizes = [1, 256], strides = [1, 1]} : vector<9x256xf32> to vector<1x256xf32>
    %52 = vector.broadcast %51 : vector<1x256xf32> to vector<96x256xf32>
    %53 = arith.mulf %49, %52 : vector<96x256xf32>
    %54 = vector.broadcast %50 : vector<96x1xf32> to vector<96x256xf32>
    %55 = arith.mulf %54, %53 : vector<96x256xf32>
    %56 = arith.addf %48, %55 : vector<96x256xf32>
    %c240_i32 = arith.constant 240 : i32
    %57 = tpu.dynamic_rotate %3 by %c240_i32 dim 1 : vector<96x256xf32>, i32 -> vector<96x256xf32>
    %58 = vector.extract_strided_slice %4 {offsets = [0, 7], sizes = [96, 1], strides = [1, 1]} : vector<96x9xf32> to vector<96x1xf32>
    %59 = vector.extract_strided_slice %5 {offsets = [7, 0], sizes = [1, 256], strides = [1, 1]} : vector<9x256xf32> to vector<1x256xf32>
    %60 = vector.broadcast %59 : vector<1x256xf32> to vector<96x256xf32>
    %61 = arith.mulf %57, %60 : vector<96x256xf32>
    %62 = vector.broadcast %58 : vector<96x1xf32> to vector<96x256xf32>
    %63 = arith.mulf %62, %61 : vector<96x256xf32>
    %64 = arith.addf %56, %63 : vector<96x256xf32>
    %c239_i32 = arith.constant 239 : i32
    %65 = tpu.dynamic_rotate %3 by %c239_i32 dim 1 : vector<96x256xf32>, i32 -> vector<96x256xf32>
    %66 = vector.extract_strided_slice %4 {offsets = [0, 8], sizes = [96, 1], strides = [1, 1]} : vector<96x9xf32> to vector<96x1xf32>
    %67 = vector.extract_strided_slice %5 {offsets = [8, 0], sizes = [1, 256], strides = [1, 1]} : vector<9x256xf32> to vector<1x256xf32>
    %68 = vector.broadcast %67 : vector<1x256xf32> to vector<96x256xf32>
    %69 = arith.mulf %65, %68 : vector<96x256xf32>
    %70 = vector.broadcast %66 : vector<96x1xf32> to vector<96x256xf32>
    %71 = arith.mulf %70, %69 : vector<96x256xf32>
    %72 = arith.addf %64, %71 : vector<96x256xf32>
    %73 = arith.truncf %72 : vector<96x256xf32> to vector<96x256xbf16>
    %c0_8 = arith.constant 0 : index
    %c0_9 = arith.constant 0 : index
    %c0_10 = arith.constant 0 : index
    %74 = vector.load %arg6[%c0_8, %c0_9, %c0_10] : memref<1x96x256xbf16, #tpu.memory_space<vmem>>, vector<1x96x256xbf16>
    %75 = vector.shape_cast %74 : vector<1x96x256xbf16> to vector<96x256xbf16>
    %76 = vector.shape_cast %73 : vector<96x256xbf16> to vector<1x96x256xbf16>
    tpu.vector_store %arg6[%c0_8, %c0_9, %c0_10], %76 {strides = array<i32>} : memref<1x96x256xbf16, #tpu.memory_space<vmem>>, vector<1x96x256xbf16>,
    return
  }
  func.func @transform_0(%arg0: i32, %arg1: i32) -> (i32, i32) {
    %c0_i32 = arith.constant 0 : i32
    %c0_i32_0 = arith.constant 0 : i32
    return %arg1, %c0_i32 : i32, i32
  }
  func.func @transform_1(%arg0: i32, %arg1: i32) -> (i32, i32) {
    %c0_i32 = arith.constant 0 : i32
    %c0_i32_0 = arith.constant 0 : i32
    return %arg1, %c0_i32 : i32, i32
  }
  func.func @transform_2(%arg0: i32, %arg1: i32) -> (i32, i32) {
    %c0_i32 = arith.constant 0 : i32
    %c0_i32_0 = arith.constant 0 : i32
    %c0_i32_1 = arith.constant 0 : i32
    return %c0_i32, %c0_i32_0 : i32, i32
  }
  func.func @transform_3(%arg0: i32, %arg1: i32) -> (i32, i32, i32) {
    %c0_i32 = arith.constant 0 : i32
    %c0_i32_0 = arith.constant 0 : i32
    %c0_i32_1 = arith.constant 0 : i32
    return %arg0, %c0_i32, %c0_i32_0 : i32, i32, i32
  }
  func.func @transform_4(%arg0: i32, %arg1: i32) -> (i32, i32, i32) {
    %c0_i32 = arith.constant 0 : i32
    %c0_i32_0 = arith.constant 0 : i32
    return %arg0, %arg1, %c0_i32 : i32, i32, i32
  }
}

module attributes {stable_mosaic.version = 11 : i64} {
  func.func @kernel(%arg0: i32, %arg1: memref<32x1xf32, #tpu.memory_space<vmem>>, %arg2: memref<32x32xf32, #tpu.memory_space<vmem>>, %arg3: memref<32x32xbf16, #tpu.memory_space<vmem>>, %arg4: memref<1x96x256xbf16, #tpu.memory_space<vmem>>, %arg5: memref<1x32x256xf32, #tpu.memory_space<vmem>>) attributes {dimension_semantics = [#tpu.dimension_semantics<parallel>], iteration_bounds = array<i64: 2>, scalar_prefetch = 0 : i64, scratch_operands = 0 : i64, tpu.core_type = #tpu.core_type<tc>, window_params = [{pipeline_mode = #tpu.pipeline_mode<synchronous>, transform_indices = @transform_0, window_bounds = array<i64: 32, 1>}, {pipeline_mode = #tpu.pipeline_mode<synchronous>, transform_indices = @transform_1, window_bounds = array<i64: 32, 32>}, {pipeline_mode = #tpu.pipeline_mode<synchronous>, transform_indices = @transform_2, window_bounds = array<i64: 32, 32>}, {transform_indices = @transform_3, window_bounds = array<i64: 1, 96, 256>}, {transform_indices = @transform_4, window_bounds = array<i64: 1, 32, 256>}]} {
    %c0 = arith.constant 0 : index
    %c0_0 = arith.constant 0 : index
    %c0_1 = arith.constant 0 : index
    %0 = vector.load %arg4[%c0, %c0_0, %c0_1] : memref<1x96x256xbf16, #tpu.memory_space<vmem>>, vector<1x32x256xbf16>
    %1 = vector.shape_cast %0 : vector<1x32x256xbf16> to vector<32x256xbf16>
    %2 = arith.extf %1 : vector<32x256xbf16> to vector<32x256xf32>
    %c0_2 = arith.constant 0 : index
    %c32 = arith.constant 32 : index
    %c0_3 = arith.constant 0 : index
    %3 = vector.load %arg4[%c0_2, %c32, %c0_3] : memref<1x96x256xbf16, #tpu.memory_space<vmem>>, vector<1x32x256xbf16>
    %4 = vector.shape_cast %3 : vector<1x32x256xbf16> to vector<32x256xbf16>
    %5 = arith.extf %4 : vector<32x256xbf16> to vector<32x256xf32>
    %c0_4 = arith.constant 0 : index
    %c64 = arith.constant 64 : index
    %c0_5 = arith.constant 0 : index
    %6 = vector.load %arg4[%c0_4, %c64, %c0_5] : memref<1x96x256xbf16, #tpu.memory_space<vmem>>, vector<1x32x256xbf16>
    %7 = vector.shape_cast %6 : vector<1x32x256xbf16> to vector<32x256xbf16>
    %8 = arith.mulf %2, %2 : vector<32x256xf32>
    %cst = arith.constant dense<0.000000e+00> : vector<32xf32>
    %9 = vector.multi_reduction <add>, %8, %cst [1] : vector<32x256xf32> to vector<32xf32>
    %10 = vector.shape_cast %9 : vector<32xf32> to vector<32x1xf32>
    %cst_6 = arith.constant 1.000000e-24 : f32
    %11 = vector.broadcast %cst_6 : f32 to vector<32x1xf32>
    %12 = arith.maximumf %10, %11 : vector<32x1xf32>
    %13 = math.rsqrt %12 : vector<32x1xf32>
    %14 = arith.mulf %5, %5 : vector<32x256xf32>
    %cst_7 = arith.constant dense<0.000000e+00> : vector<32xf32>
    %15 = vector.multi_reduction <add>, %14, %cst_7 [1] : vector<32x256xf32> to vector<32xf32>
    %16 = vector.shape_cast %15 : vector<32xf32> to vector<32x1xf32>
    %cst_8 = arith.constant 1.000000e-24 : f32
    %17 = vector.broadcast %cst_8 : f32 to vector<32x1xf32>
    %18 = arith.maximumf %16, %17 : vector<32x1xf32>
    %19 = math.rsqrt %18 : vector<32x1xf32>
    %c0_9 = arith.constant 0 : index
    %c0_10 = arith.constant 0 : index
    %20 = vector.load %arg1[%c0_9, %c0_10] : memref<32x1xf32, #tpu.memory_space<vmem>>, vector<32x1xf32>
    %21 = arith.mulf %13, %20 : vector<32x1xf32>
    %22 = vector.broadcast %21 : vector<32x1xf32> to vector<32x256xf32>
    %23 = arith.mulf %2, %22 : vector<32x256xf32>
    %24 = arith.truncf %23 : vector<32x256xf32> to vector<32x256xbf16>
    %25 = vector.broadcast %19 : vector<32x1xf32> to vector<32x256xf32>
    %26 = arith.mulf %5, %25 : vector<32x256xf32>
    %27 = arith.truncf %26 : vector<32x256xf32> to vector<32x256xbf16>
    %cst_11 = arith.constant dense<0.000000e+00> : vector<32x32xf32>
    %28 = tpu.matmul %24, %27, %cst_11 {dimension_numbers = #tpu.dot_dimension_numbers<[1], [1], [0], [0], [0, 0, 1, 0], [], []>} : vector<32x256xbf16>, vector<32x256xbf16>, vector<32x32xf32> -> vector<32x32xf32>
    %c0_12 = arith.constant 0 : index
    %c0_13 = arith.constant 0 : index
    %29 = vector.load %arg2[%c0_12, %c0_13] : memref<32x32xf32, #tpu.memory_space<vmem>>, vector<32x32xf32>
    %30 = arith.addf %28, %29 : vector<32x32xf32>
    %cst_14 = arith.constant dense<0xFF800000> : vector<32xf32>
    %31 = vector.multi_reduction <maximumf>, %30, %cst_14 [1] : vector<32x32xf32> to vector<32xf32>
    %32 = vector.shape_cast %31 : vector<32xf32> to vector<32x1xf32>
    %33 = vector.broadcast %32 : vector<32x1xf32> to vector<32x32xf32>
    %34 = arith.subf %30, %33 : vector<32x32xf32>
    %35 = math.exp %34 : vector<32x32xf32>
    %cst_15 = arith.constant dense<0.000000e+00> : vector<32xf32>
    %36 = vector.multi_reduction <add>, %35, %cst_15 [1] : vector<32x32xf32> to vector<32xf32>
    %37 = vector.shape_cast %36 : vector<32xf32> to vector<32x1xf32>
    %38 = tpu.reciprocal %37 {approx = true} : vector<32x1xf32> -> vector<32x1xf32>
    %39 = vector.broadcast %38 : vector<32x1xf32> to vector<32x32xf32>
    %40 = arith.mulf %35, %39 : vector<32x32xf32>
    %41 = arith.truncf %40 : vector<32x32xf32> to vector<32x32xbf16>
    %cst_16 = arith.constant dense<0.000000e+00> : vector<32x256xf32>
    %42 = tpu.matmul %41, %7, %cst_16 {dimension_numbers = #tpu.dot_dimension_numbers<[1], [0], [0], [1], [0, 0, 1, 1], [], []>} : vector<32x32xbf16>, vector<32x256xbf16>, vector<32x256xf32> -> vector<32x256xf32>
    %c0_17 = arith.constant 0 : index
    %c0_18 = arith.constant 0 : index
    %43 = vector.load %arg3[%c0_17, %c0_18] : memref<32x32xbf16, #tpu.memory_space<vmem>>, vector<32x32xbf16>
    %44 = arith.truncf %42 : vector<32x256xf32> to vector<32x256xbf16>
    %cst_19 = arith.constant dense<0.000000e+00> : vector<32x256xf32>
    %45 = tpu.matmul %43, %44, %cst_19 {dimension_numbers = #tpu.dot_dimension_numbers<[1], [0], [0], [1], [0, 0, 1, 1], [], []>} : vector<32x32xbf16>, vector<32x256xbf16>, vector<32x256xf32> -> vector<32x256xf32>
    %c0_20 = arith.constant 0 : index
    %c0_21 = arith.constant 0 : index
    %c0_22 = arith.constant 0 : index
    %46 = vector.load %arg5[%c0_20, %c0_21, %c0_22] : memref<1x32x256xf32, #tpu.memory_space<vmem>>, vector<1x32x256xf32>
    %47 = vector.shape_cast %46 : vector<1x32x256xf32> to vector<32x256xf32>
    %48 = vector.shape_cast %45 : vector<32x256xf32> to vector<1x32x256xf32>
    tpu.vector_store %arg5[%c0_20, %c0_21, %c0_22], %48 {strides = array<i32>} : memref<1x32x256xf32, #tpu.memory_space<vmem>>, vector<1x32x256xf32>,
    return
  }
  func.func @transform_0(%arg0: i32) -> (i32, i32) {
    %c0_i32 = arith.constant 0 : i32
    %c0_i32_0 = arith.constant 0 : i32
    %c0_i32_1 = arith.constant 0 : i32
    return %c0_i32, %c0_i32_0 : i32, i32
  }
  func.func @transform_1(%arg0: i32) -> (i32, i32) {
    %c0_i32 = arith.constant 0 : i32
    %c0_i32_0 = arith.constant 0 : i32
    %c0_i32_1 = arith.constant 0 : i32
    return %c0_i32, %c0_i32_0 : i32, i32
  }
  func.func @transform_2(%arg0: i32) -> (i32, i32) {
    %c0_i32 = arith.constant 0 : i32
    %c0_i32_0 = arith.constant 0 : i32
    %c0_i32_1 = arith.constant 0 : i32
    return %c0_i32, %c0_i32_0 : i32, i32
  }
  func.func @transform_3(%arg0: i32) -> (i32, i32, i32) {
    %c0_i32 = arith.constant 0 : i32
    %c0_i32_0 = arith.constant 0 : i32
    %c0_i32_1 = arith.constant 0 : i32
    return %arg0, %c0_i32, %c0_i32_0 : i32, i32, i32
  }
  func.func @transform_4(%arg0: i32) -> (i32, i32, i32) {
    %c0_i32 = arith.constant 0 : i32
    %c0_i32_0 = arith.constant 0 : i32
    %c0_i32_1 = arith.constant 0 : i32
    return %arg0, %c0_i32, %c0_i32_0 : i32, i32, i32
  }
}

</mosaic_0001>

<llo_original>
// kernel: mha_forward.3
$region0: #{mha_forward.3}
  #allocation0 [shape = 'u32[]', space=smem, size = 0x4, offset = 0x4, fixed_abs, tag = 'smem constant byte address 0x4 - core index']
  #allocation1 [shape = 'u32[144,128]{1,0:T(1,128)}', space=vmem, size = 0x12000, scoped, tag = 'internal scratch']
  %s0 = inlined_call_operand.vmem [shape: f32[32,1], index: 0, kind: input, shape index: {}]
  %s1 = inlined_call_operand.vmem [shape: f32[32,32], index: 1, kind: input, shape index: {}]
  %s2 = inlined_call_operand.vmem [shape: bf16[32,32], index: 2, kind: input, shape index: {}]
  %s3 = inlined_call_operand.vmem [shape: bf16[2,96,256], index: 3, kind: input, shape index: {}]
  %s4 = inlined_call_operand.vmem [shape: f32[2,32,256], index: 4, kind: output, shape index: {}]
  %s5 = sld [smem:[#allocation0]]
  $region49: #{mha_forward.3} parent=0
    _
  %s7 = ssub.s32 1, %s5
  %s8 = scalar_select 0, %s7, %s5
  loop: start=0, step=1, limit=4
  $region2: #{mha_forward.3} parent=0 // loop_pre_header
    _
  $region3: #{mha_forward.3} parent=0 // loop_header
    %s10 = sphi 0, %s14
    %p11 = scmp.ge.s32.totalorder %s10, 4
    %s18 = sphi 0, %s18
    %s20 = sphi 0, %s18
    %s21 = sphi 0, %s20
    %s35 = sphi 0, %s21
    %s39 = sphi 0, %s39
    %s41 = sphi 0, %s39
    %s42 = sphi 0, %s41
    %s56 = sphi 0, %s42
    %s60 = sphi 0, %s60
    %s62 = sphi 0, %s60
    %s63 = sphi 0, %s62
    %s77 = sphi 0, %s63
    %s83 = sphi 0, %s85
    %s86 = sphi 0, %s83
    %s87 = sphi 0, %s86
    %s103 = sphi 0, %s87
    %s109 = sphi 0, %s111
    %s112 = sphi 0, %s109
    %s113 = sphi 0, %s112
    %s129 = sphi 0, %s113
  $region4: #{mha_forward.3} parent=0 // loop_header_branch
    %13 = sbr.rel (%p11) target = $region8
  $region5: #{mha_forward.3} parent=0 // loop_body
    %s15 = ssub.s32 %s10, 1
    %s16 = ssub.s32 %s10, 2
    %s17 = sadd.s32 %s10, 1
    %s19 = sadd.s32 %s18, 1
    %p22 = scmp.eq.s32.totalorder %s10, 1
    %p23 = scmp.ne.s32.totalorder %s18, %s20
    %p24 = scmp.eq.s32.totalorder %s10, 0
    %p25 = por %p23, %p24
    %p26 = scmp.ne.s32.totalorder %s18, %s20
    %p27 = scmp.eq.s32.totalorder %s15, 1
    %p28 = por %p26, %p27
    %p29 = scmp.ne.s32.totalorder %s20, %s21
    %p30 = scmp.eq.s32.totalorder %s15, 0
    %p31 = por %p29, %p30
    %p32 = scmp.ne.s32.totalorder %s20, %s21
    %p33 = scmp.eq.s32.totalorder %s16, 1
    %p34 = por %p32, %p33
    %p36 = scmp.ne.s32.totalorder %s21, %s35
    %p37 = scmp.eq.s32.totalorder %s16, 0
    %p38 = por %p36, %p37
    %s40 = sadd.s32 %s39, 1
    %p43 = scmp.eq.s32.totalorder %s10, 1
    %p44 = scmp.ne.s32.totalorder %s39, %s41
    %p45 = scmp.eq.s32.totalorder %s10, 0
    %p46 = por %p44, %p45
    %p47 = scmp.ne.s32.totalorder %s39, %s41
    %p48 = scmp.eq.s32.totalorder %s15, 1
    %p49 = por %p47, %p48
    %p50 = scmp.ne.s32.totalorder %s41, %s42
    %p51 = scmp.eq.s32.totalorder %s15, 0
    %p52 = por %p50, %p51
    %p53 = scmp.ne.s32.totalorder %s41, %s42
    %p54 = scmp.eq.s32.totalorder %s16, 1
    %p55 = por %p53, %p54
    %p57 = scmp.ne.s32.totalorder %s42, %s56
    %p58 = scmp.eq.s32.totalorder %s16, 0
    %p59 = por %p57, %p58
    %s61 = sadd.s32 %s60, 1
    %p64 = scmp.eq.s32.totalorder %s10, 1
    %p65 = scmp.ne.s32.totalorder %s60, %s62
    %p66 = scmp.eq.s32.totalorder %s10, 0
    %p67 = por %p65, %p66
    %p68 = scmp.ne.s32.totalorder %s60, %s62
    %p69 = scmp.eq.s32.totalorder %s15, 1
    %p70 = por %p68, %p69
    %p71 = scmp.ne.s32.totalorder %s62, %s63
    %p72 = scmp.eq.s32.totalorder %s15, 0
    %p73 = por %p71, %p72
    %p74 = scmp.ne.s32.totalorder %s62, %s63
    %p75 = scmp.eq.s32.totalorder %s16, 1
    %p76 = por %p74, %p75
    %p78 = scmp.ne.s32.totalorder %s63, %s77
    %p79 = scmp.eq.s32.totalorder %s16, 0
    %p80 = por %p78, %p79
    %s81 = ssub.s32 %s10, %s17
    %p82 = scmp.eq.s32.totalorder %s81, 0
    %s84 = sadd.s32 %s83, 1
    %s85 = scalar_select %p82, %s83, %s84
    %p88 = pneg %p82
    %p89 = scmp.eq.s32.totalorder %s10, 1
    %p90 = por %p88, %p89
    %p91 = scmp.ne.s32.totalorder %s83, %s86
    %p92 = scmp.eq.s32.totalorder %s10, 0
    %p93 = por %p91, %p92
    %p94 = scmp.ne.s32.totalorder %s83, %s86
    %p95 = scmp.eq.s32.totalorder %s15, 1
    %p96 = por %p94, %p95
    %p97 = scmp.ne.s32.totalorder %s86, %s87
    %p98 = scmp.eq.s32.totalorder %s15, 0
    %p99 = por %p97, %p98
    %p100 = scmp.ne.s32.totalorder %s86, %s87
    %p101 = scmp.eq.s32.totalorder %s16, 1
    %p102 = por %p100, %p101
    %p104 = scmp.ne.s32.totalorder %s87, %s103
    %p105 = scmp.eq.s32.totalorder %s16, 0
    %p106 = por %p104, %p105
    %s107 = ssub.s32 %s10, %s17
    %p108 = scmp.eq.s32.totalorder %s107, 0
    %s110 = sadd.s32 %s109, 1
    %s111 = scalar_select %p108, %s109, %s110
    %p114 = pneg %p108
    %p115 = scmp.eq.s32.totalorder %s10, 1
    %p116 = por %p114, %p115
    %p117 = scmp.ne.s32.totalorder %s109, %s112
    %p118 = scmp.eq.s32.totalorder %s10, 0
    %p119 = por %p117, %p118
    %p120 = scmp.ne.s32.totalorder %s109, %s112
    %p121 = scmp.eq.s32.totalorder %s15, 1
    %p122 = por %p120, %p121
    %p123 = scmp.ne.s32.totalorder %s112, %s113
    %p124 = scmp.eq.s32.totalorder %s15, 0
    %p125 = por %p123, %p124
    %p126 = scmp.ne.s32.totalorder %s112, %s113
    %p127 = scmp.eq.s32.totalorder %s16, 1
    %p128 = por %p126, %p127
    %p130 = scmp.ne.s32.totalorder %s113, %s129
    %p131 = scmp.eq.s32.totalorder %s16, 0
    %p132 = por %p130, %p131
    %p133 = scmp.le.s32.totalorder 1, %s10
    %p134 = scmp.lt.s32.totalorder %s10, 3
    %p135 = pnand %p133, %p134
    %p136 = pneg %p135
    // Predicated region
    $region9: #{mha_forward.3} parent=5 // pred_check
      _
    $region10: #{mha_forward.3} parent=5 // pred_check_branch
      %138 = sbr.rel (%p135) target = $region12
    $region11: #{mha_forward.3} parent=5 // pred_region
      %s139 = ssub.s32 %s10, 1
      // Predicated region
      $region13: #{mha_forward.3} parent=11 // pred_check
        %p140 = pneg %p31
      $region14: #{mha_forward.3} parent=11 // pred_check_branch
        %142 = sbr.rel (%p140) target = $region16
      $region15: #{mha_forward.3} parent=11 // pred_region
        _
      $region16: #{mha_forward.3} parent=11 // pred_fallthru
        _
      // Predicated region
      $region17: #{mha_forward.3} parent=11 // pred_check
        %p143 = pneg %p52
      $region18: #{mha_forward.3} parent=11 // pred_check_branch
        %145 = sbr.rel (%p143) target = $region20
      $region19: #{mha_forward.3} parent=11 // pred_region
        _
      $region20: #{mha_forward.3} parent=11 // pred_fallthru
        _
      // Predicated region
      $region21: #{mha_forward.3} parent=11 // pred_check
        %p146 = pneg %p73
      $region22: #{mha_forward.3} parent=11 // pred_check_branch
        %148 = sbr.rel (%p146) target = $region24
      $region23: #{mha_forward.3} parent=11 // pred_region
        _
      $region24: #{mha_forward.3} parent=11 // pred_fallthru
        _
    $region12: #{mha_forward.3} parent=5 // pred_fallthru
      _
    %p149 = scmp.lt.s32.totalorder %s10, 2
    // Predicated region
    $region25: #{mha_forward.3} parent=5 // pred_check
      %p150 = pneg %p149
    $region26: #{mha_forward.3} parent=5 // pred_check_branch
      %152 = sbr.rel (%p150) target = $region28
    $region27: #{mha_forward.3} parent=5 // pred_region
      // Predicated region
      $region29: #{mha_forward.3} parent=27 // pred_check
        %p153 = pneg %p93
      $region30: #{mha_forward.3} parent=27 // pred_check_branch
        %155 = sbr.rel (%p153) target = $region32
      $region31: #{mha_forward.3} parent=27 // pred_region
        %p156 = scmp.lt.s32.totalorder %s10, 1
        %s157 = scalar_select %p156, %s10, 1
        %s158 = smul.addr %s157, 24
        %s159 = smul.addr %s158, 4
        %s160 = scalar_lea.vmem %s3, %s159
      $region32: #{mha_forward.3} parent=27 // pred_fallthru
        _
    $region28: #{mha_forward.3} parent=5 // pred_fallthru
      _
    %p161 = scmp.le.s32.totalorder 1, %s10
    %p162 = scmp.lt.s32.totalorder %s10, 3
    %p163 = pnand %p161, %p162
    %p164 = pneg %p163
    // Predicated region
    $region33: #{mha_forward.3} parent=5 // pred_check
      _
    $region34: #{mha_forward.3} parent=5 // pred_check_branch
      %166 = sbr.rel (%p163) target = $region36
    $region35: #{mha_forward.3} parent=5 // pred_region
      %s167 = ssub.s32 %s10, 1
      %p168 = pneg %p31
      %p169 = pneg %p28
      %p170 = pneg %p52
      %p171 = pneg %p49
      %p172 = pneg %p73
      %p173 = pneg %p70
      %p174 = scmp.lt.s32.totalorder %s15, 1
      %s175 = scalar_select %p174, %s15, 1
      %s176 = smul.addr %s175, 24
      %s177 = smul.addr %s176, 4
      %s178 = scalar_lea.vmem %s3, %s177
      %p179 = pneg %p99
      %p180 = pneg %p96
      %p181 = pneg %p125
      %p182 = pneg %p122
      %p183 = scmp.lt.s32.totalorder %s15, 1
      %s184 = scalar_select %p183, %s15, 1
      %s185 = smul.addr %s184, 8
      %s186 = smul.addr %s185, 8
      %s187 = scalar_lea.vmem %s4, %s186
      %p188 = scmp.lt.s32.totalorder %s15, 1
      %s189 = scalar_select %p188, %s15, 1
      %s190 = smul.addr %s189, 24
      %s191 = smul.addr %s190, 4
      %s192 = scalar_lea.vmem %s3, %s191
      %p193 = scmp.lt.s32.totalorder %s15, 1
      %s194 = scalar_select %p193, %s15, 1
      %s195 = smul.addr %s194, 8
      %s196 = smul.addr %s195, 8
      %s197 = scalar_lea.vmem %s4, %s196
      %v199 = vld [vmem:[%s192] sm:$0xff]
      %v200 = vld [vmem:[%s192 + $0x8] sm:$0xff]
      %v201 = vld [vmem:[%s192 + $0x10] sm:$0xff]
      %v202 = vld [vmem:[%s192 + $0x18] sm:$0xff]
      %v203 = vunpack.c.l.bf16 %v199
      %v204 = vunpack.c.h.bf16 %v199
      %v205 = vunpack.c.l.bf16 %v200
      %v206 = vunpack.c.h.bf16 %v200
      %v207 = vunpack.c.l.bf16 %v201
      %v208 = vunpack.c.h.bf16 %v201
      %v209 = vunpack.c.l.bf16 %v202
      %v210 = vunpack.c.h.bf16 %v202
      %v211 = vld [vmem:[%s192 + $0x20] sm:$0xff]
      %v212 = vld [vmem:[%s192 + $0x28] sm:$0xff]
      %v213 = vld [vmem:[%s192 + $0x30] sm:$0xff]
      %v214 = vld [vmem:[%s192 + $0x38] sm:$0xff]
      %v215 = vunpack.c.l.bf16 %v211
      %v216 = vunpack.c.h.bf16 %v211
      %v217 = vunpack.c.l.bf16 %v212
      %v218 = vunpack.c.h.bf16 %v212
      %v219 = vunpack.c.l.bf16 %v213
      %v220 = vunpack.c.h.bf16 %v213
      %v221 = vunpack.c.l.bf16 %v214
      %v222 = vunpack.c.h.bf16 %v214
      %v223 = vld [vmem:[%s192 + $0x40] sm:$0xff]
      %v224 = vld [vmem:[%s192 + $0x48] sm:$0xff]
      %v225 = vld [vmem:[%s192 + $0x50] sm:$0xff]
      %v226 = vld [vmem:[%s192 + $0x58] sm:$0xff]
      %v227 = vmul.f32 %v203, %v203
      %v228 = vmul.f32 %v204, %v204
      %v229 = vmul.f32 %v205, %v205
      %v230 = vmul.f32 %v206, %v206
      %v231 = vmul.f32 %v207, %v207
      %v232 = vmul.f32 %v208, %v208
      %v233 = vmul.f32 %v209, %v209
      %v234 = vmul.f32 %v210, %v210
      %v235 = vadd.f32 %v227, %v228
      %236 = vadd.xlane.f32.xlu0 %v235
      %v237 = vpop.xlane.xlu0 %236
      %v238 = vadd.f32 %v229, %v230
      %239 = vadd.xlane.f32.xlu0 %v238
      %v240 = vpop.xlane.xlu0 %239
      %v241 = vadd.f32 %v231, %v232
      %242 = vadd.xlane.f32.xlu0 %v241
      %v243 = vpop.xlane.xlu0 %242
      %v244 = vadd.f32 %v233, %v234
      %245 = vadd.xlane.f32.xlu0 %v244
      %v246 = vpop.xlane.xlu0 %245
      %v247 = vmax.f32 %v237, 1e-24
      %v248 = vmax.f32 %v240, 1e-24
      %v249 = vmax.f32 %v243, 1e-24
      %v250 = vmax.f32 %v246, 1e-24
      %v251 = vrsqrt.pop %v247
      %v252 = vrsqrt.pop %v248
      %v253 = vrsqrt.pop %v249
      %v254 = vrsqrt.pop %v250
      %v255 = vmul.f32 %v215, %v215
      %v256 = vmul.f32 %v216, %v216
      %v257 = vmul.f32 %v217, %v217
      %v258 = vmul.f32 %v218, %v218
      %v259 = vmul.f32 %v219, %v219
      %v260 = vmul.f32 %v220, %v220
      %v261 = vmul.f32 %v221, %v221
      %v262 = vmul.f32 %v222, %v222
      %v263 = vadd.f32 %v255, %v256
      %264 = vadd.xlane.f32.xlu0 %v263
      %v265 = vpop.xlane.xlu0 %264
      %v266 = vadd.f32 %v257, %v258
      %267 = vadd.xlane.f32.xlu0 %v266
      %v268 = vpop.xlane.xlu0 %267
      %v269 = vadd.f32 %v259, %v260
      %270 = vadd.xlane.f32.xlu0 %v269
      %v271 = vpop.xlane.xlu0 %270
      %v272 = vadd.f32 %v261, %v262
      %273 = vadd.xlane.f32.xlu0 %v272
      %v274 = vpop.xlane.xlu0 %273
      %v275 = vmax.f32 %v265, 1e-24
      %v276 = vmax.f32 %v268, 1e-24
      %v277 = vmax.f32 %v271, 1e-24
      %v278 = vmax.f32 %v274, 1e-24
      %v279 = vrsqrt.pop %v275
      %v280 = vrsqrt.pop %v276
      %v281 = vrsqrt.pop %v277
      %v282 = vrsqrt.pop %v278
      %v283 = vld [vmem:[%s0] sm:$0xff]
      %v284 = vld [vmem:[%s0 + $0x8] sm:$0xff]
      %v285 = vld [vmem:[%s0 + $0x10] sm:$0xff]
      %v286 = vld [vmem:[%s0 + $0x18] sm:$0xff]
      %v287 = vmul.f32 %v251, %v283
      %v288 = vmul.f32 %v252, %v284
      %v289 = vmul.f32 %v253, %v285
      %v290 = vmul.f32 %v254, %v286
      %292 = vset.pattern.permute.xlu0 0
      %293 = vperm.xlu0 %292, %v287
      %v294 = vpop.permute.xlu0 %293
      %297 = vset.pattern.permute.xlu0 0
      %298 = vperm.xlu0 %297, %v288
      %v299 = vpop.permute.xlu0 %298
      %302 = vset.pattern.permute.xlu0 0
      %303 = vperm.xlu0 %302, %v289
      %v304 = vpop.permute.xlu0 %303
      %307 = vset.pattern.permute.xlu0 0
      %308 = vperm.xlu0 %307, %v290
      %v309 = vpop.permute.xlu0 %308
      %v311 = vmul.f32 %v203, %v294
      %v312 = vmul.f32 %v204, %v294
      %v313 = vmul.f32 %v205, %v299
      %v314 = vmul.f32 %v206, %v299
      %v315 = vmul.f32 %v207, %v304
      %v316 = vmul.f32 %v208, %v304
      %v317 = vmul.f32 %v209, %v309
      %v318 = vmul.f32 %v210, %v309
      %v319 = vpack.c.bf16 %v313, %v311
      %v320 = vpack.c.bf16 %v314, %v312
      %v321 = vpack.c.bf16 %v317, %v315
      %v322 = vpack.c.bf16 %v318, %v316
      %v323 = vmul.f32 %v215, %v279
      %v324 = vmul.f32 %v216, %v279
      %v325 = vmul.f32 %v217, %v280
      %v326 = vmul.f32 %v218, %v280
      %v327 = vmul.f32 %v219, %v281
      %v328 = vmul.f32 %v220, %v281
      %v329 = vmul.f32 %v221, %v282
      %v330 = vmul.f32 %v222, %v282
      %v331 = vpack.c.bf16 %v325, %v323
      %v332 = vpack.c.bf16 %v326, %v324
      %v333 = vpack.c.bf16 %v329, %v327
      %v334 = vpack.c.bf16 %v330, %v328
      %v335 = vld [vmem:[%s1] sm:$0xff]
      %v336 = vld [vmem:[%s1 + $0x8] sm:$0xff]
      %v337 = vld [vmem:[%s1 + $0x10] sm:$0xff]
      %v338 = vld [vmem:[%s1 + $0x18] sm:$0xff]
      %339 = vmatprep.subr.bf16.mxu0 %v332
      %340 = vmatpush1.bf16.xpose.msra.mxu0 %v331
      %341 = vmatprep.subr.bf16.mxu0 %v334
      %342 = vmatpush1.bf16.xpose.msra.mxu0 %v333
      %343 = vmatprep.subr.bf16.mxu0 0
      %344 = vmatpush1.bf16.xpose.msra.mxu0 0
      %345 = vmatprep.subr.bf16.mxu0 0
      %346 = vmatpush1.bf16.xpose.msra.mxu0 0
      %347 = vmatprep.subr.bf16.mxu0 0
      %348 = vmatpush1.bf16.xpose.msra.mxu0 0
      %349 = vmatprep.subr.bf16.mxu0 0
      %350 = vmatpush1.bf16.xpose.msra.mxu0 0
      %351 = vmatprep.subr.bf16.mxu0 0
      %352 = vmatpush1.bf16.xpose.msra.mxu0 0
      %353 = vmatprep.subr.bf16.mxu0 0
      %354 = vmatpush1.bf16.xpose.msra.mxu0 0
      %355 = vmatprep.subr.bf16.mxu0 0
      %356 = vmatpush1.bf16.xpose.msra.mxu0 0
      %357 = vmatprep.subr.bf16.mxu0 0
      %358 = vmatpush1.bf16.xpose.msra.mxu0 0
      %359 = vmatprep.subr.bf16.mxu0 0
      %360 = vmatpush1.bf16.xpose.msra.mxu0 0
      %361 = vmatprep.subr.bf16.mxu0 0
      %362 = vmatpush1.bf16.xpose.msra.mxu0 0
      %363 = vmatprep.subr.bf16.mxu0 0
      %364 = vmatpush1.bf16.xpose.msra.mxu0 0
      %365 = vmatprep.subr.bf16.mxu0 0
      %366 = vmatpush1.bf16.xpose.msra.mxu0 0
      %367 = vmatprep.subr.bf16.mxu0 0
      %368 = vmatpush1.bf16.xpose.msra.mxu0 0
      %369 = vmatprep.subr.bf16.mxu0 0
      %370 = vmatpush1.bf16.xpose.msra.mxu0 0
      %371 = vmatprep.mubr.bf16.mxu0 %v320
      %372 = vmatmul.mubr.bf16.gmra.mrb[0].mxu0 %v319
      %v373 = vpop.f32.mrb[0].mxu0
      %v374 = vadd.f32 %v335, %v373
      %v375 = vpop.f32.mrb[0].mxu0
      %v376 = vpop.f32.mrb[0].mxu0
      %v377 = vadd.f32 %v336, %v376
      %v378 = vpop.f32.mrb[0].mxu0
      %379 = vmatprep.mubr.bf16.mxu0 %v322
      %380 = vmatmul.mubr.bf16.gmra.mrb[0].mxu0 %v321
      %v381 = vpop.f32.mrb[0].mxu0
      %v382 = vadd.f32 %v337, %v381
      %v383 = vpop.f32.mrb[0].mxu0
      %v384 = vpop.f32.mrb[0].mxu0
      %v385 = vadd.f32 %v338, %v384
      %v386 = vpop.f32.mrb[0].mxu0
      %387 = vdwg.mxu0
      %vm388 = vcmask 261120
      %v389 = vsel %vm388, %v374, -inf
      %390 = vmax.xlane.f32.xlu0 %v389
      %v391 = vpop.xlane.xlu0 %390
      %v392 = vsel %vm388, %v377, -inf
      %393 = vmax.xlane.f32.xlu0 %v392
      %v394 = vpop.xlane.xlu0 %393
      %v395 = vsel %vm388, %v382, -inf
      %396 = vmax.xlane.f32.xlu0 %v395
      %v397 = vpop.xlane.xlu0 %396
      %v398 = vsel %vm388, %v385, -inf
      %399 = vmax.xlane.f32.xlu0 %v398
      %v400 = vpop.xlane.xlu0 %399
      %v401 = vsub.f32 %v374, %v391
      %v402 = vsub.f32 %v377, %v394
      %v403 = vsub.f32 %v382, %v397
      %v404 = vsub.f32 %v385, %v400
      %v405 = vmul.f32 %v401, 1.442695
      %v406 = vpow.pop %v405
      %v407 = vmul.f32 %v402, 1.442695
      %v408 = vpow.pop %v407
      %v409 = vmul.f32 %v403, 1.442695
      %v410 = vpow.pop %v409
      %v411 = vmul.f32 %v404, 1.442695
      %v412 = vpow.pop %v411
      %v413 = vsel %vm388, %v406, 0.0
      %414 = vadd.xlane.f32.xlu0 %v413
      %v415 = vpop.xlane.xlu0 %414
      %v416 = vsel %vm388, %v408, 0.0
      %417 = vadd.xlane.f32.xlu0 %v416
      %v418 = vpop.xlane.xlu0 %417
      %v419 = vsel %vm388, %v410, 0.0
      %420 = vadd.xlane.f32.xlu0 %v419
      %v421 = vpop.xlane.xlu0 %420
      %v422 = vsel %vm388, %v412, 0.0
      %423 = vadd.xlane.f32.xlu0 %v422
      %v424 = vpop.xlane.xlu0 %423
      %v425 = vrcp.pop %v415
      %v426 = vrcp.pop %v418
      %v427 = vrcp.pop %v421
      %v428 = vrcp.pop %v424
      %v429 = vmul.f32 %v406, %v425
      %v430 = vmul.f32 %v408, %v426
      %v431 = vmul.f32 %v410, %v427
      %v432 = vmul.f32 %v412, %v428
      %v433 = vpack.c.bf16 %v430, %v429
      %v434 = vpack.c.bf16 %v432, %v431
      %v439 = vunpack.c.l.b16 %v223
      %v440 = vunpack.c.h.b16 %v223
      %v441 = vunpack.c.l.b16 %v224
      %v442 = vunpack.c.h.b16 %v224
      %v443 = vunpack.c.l.b16 %v225
      %v444 = vunpack.c.h.b16 %v225
      %v445 = vunpack.c.l.b16 %v226
      %v446 = vunpack.c.h.b16 %v226
      %v447 = vpack.c.b16 %v441, %v439
      %v448 = vpack.c.b16 %v442, %v440
      %v449 = vpack.c.b16 %v445, %v443
      %v450 = vpack.c.b16 %v446, %v444
      %v456 = vsel %vm388, %v433, 0
      %v459 = vsel %vm388, %v434, 0
      %461 = vmatprep.subr.bf16.mxu0 %v448
      %462 = vmatpush1.bf16.msra.mxu0 %v447
      %463 = vmatprep.subr.bf16.mxu0 %v450
      %464 = vmatpush1.bf16.msra.mxu0 %v449
      %465 = vmatprep.subr.bf16.mxu0 0
      %466 = vmatpush1.bf16.msra.mxu0 0
      %467 = vmatprep.subr.bf16.mxu0 0
      %468 = vmatpush1.bf16.msra.mxu0 0
      %469 = vmatprep.subr.bf16.mxu0 0
      %470 = vmatpush1.bf16.msra.mxu0 0
      %471 = vmatprep.subr.bf16.mxu0 0
      %472 = vmatpush1.bf16.msra.mxu0 0
      %473 = vmatprep.subr.bf16.mxu0 0
      %474 = vmatpush1.bf16.msra.mxu0 0
      %475 = vmatprep.subr.bf16.mxu0 0
      %476 = vmatpush1.bf16.msra.mxu0 0
      %477 = vmatprep.subr.bf16.mxu0 0
      %478 = vmatpush1.bf16.msra.mxu0 0
      %479 = vmatprep.subr.bf16.mxu0 0
      %480 = vmatpush1.bf16.msra.mxu0 0
      %481 = vmatprep.subr.bf16.mxu0 0
      %482 = vmatpush1.bf16.msra.mxu0 0
      %483 = vmatprep.subr.bf16.mxu0 0
      %484 = vmatpush1.bf16.msra.mxu0 0
      %485 = vmatprep.subr.bf16.mxu0 0
      %486 = vmatpush1.bf16.msra.mxu0 0
      %487 = vmatprep.subr.bf16.mxu0 0
      %488 = vmatpush1.bf16.msra.mxu0 0
      %489 = vmatprep.subr.bf16.mxu0 0
      %490 = vmatpush1.bf16.msra.mxu0 0
      %491 = vmatprep.subr.bf16.mxu0 0
      %492 = vmatpush1.bf16.msra.mxu0 0
      %493 = vmatprep.mubr.bf16.mxu0 0
      %494 = vmatmul.mubr.bf16.gmra.mrb[0].mxu0 %v456
      %v495 = vpop.f32.mrb[0].mxu0
      %v496 = vadd.f32 0.0, %v495
      %v497 = vpop.f32.mrb[0].mxu0
      %v498 = vadd.f32 0.0, %v497
      %v499 = vpop.f32.mrb[0].mxu0
      %v500 = vadd.f32 0.0, %v499
      %v501 = vpop.f32.mrb[0].mxu0
      %v502 = vadd.f32 0.0, %v501
      %503 = vmatprep.mubr.bf16.mxu0 0
      %504 = vmatmul.mubr.bf16.gmra.mrb[0].mxu0 %v459
      %v505 = vpop.f32.mrb[0].mxu0
      %v506 = vadd.f32 0.0, %v505
      %v507 = vpop.f32.mrb[0].mxu0
      %v508 = vadd.f32 0.0, %v507
      %v509 = vpop.f32.mrb[0].mxu0
      %v510 = vadd.f32 0.0, %v509
      %v511 = vpop.f32.mrb[0].mxu0
      %v512 = vadd.f32 0.0, %v511
      %513 = vdwg.mxu0
      %v514 = vld [vmem:[%s2] sm:$0xf]
      %v515 = vld [vmem:[%s2 + $0x4] sm:$0xf]
      %v516 = vld [vmem:[%s2 + $0x8] sm:$0xf]
      %v517 = vld [vmem:[%s2 + $0xc] sm:$0xf]
      %v518 = vpack.c.bf16 %v500, %v496
      %v519 = vpack.c.bf16 %v502, %v498
      %v520 = vpack.c.bf16 %v510, %v506
      %v521 = vpack.c.bf16 %v512, %v508
      %v526 = vunpack.c.l.b16 %v514
      %v527 = vunpack.c.l.b16 %v515
      %v528 = vunpack.c.l.b16 %v516
      %v529 = vunpack.c.l.b16 %v517
      %v530 = vpack.c.b16 %v527, %v526
      %v531 = vpack.c.b16 %v529, %v528
      %v533 = vsel %vm388, %v530, 0
      %v536 = vsel %vm388, %v531, 0
      %538 = vmatprep.subr.bf16.mxu0 %v519
      %539 = vmatpush1.bf16.msra.mxu0 %v518
      %540 = vmatprep.subr.bf16.mxu0 %v521
      %541 = vmatpush1.bf16.msra.mxu0 %v520
      %542 = vmatprep.subr.bf16.mxu0 0
      %543 = vmatpush1.bf16.msra.mxu0 0
      %544 = vmatprep.subr.bf16.mxu0 0
      %545 = vmatpush1.bf16.msra.mxu0 0
      %546 = vmatprep.subr.bf16.mxu0 0
      %547 = vmatpush1.bf16.msra.mxu0 0
      %548 = vmatprep.subr.bf16.mxu0 0
      %549 = vmatpush1.bf16.msra.mxu0 0
      %550 = vmatprep.subr.bf16.mxu0 0
      %551 = vmatpush1.bf16.msra.mxu0 0
      %552 = vmatprep.subr.bf16.mxu0 0
      %553 = vmatpush1.bf16.msra.mxu0 0
      %554 = vmatprep.subr.bf16.mxu0 0
      %555 = vmatpush1.bf16.msra.mxu0 0
      %556 = vmatprep.subr.bf16.mxu0 0
      %557 = vmatpush1.bf16.msra.mxu0 0
      %558 = vmatprep.subr.bf16.mxu0 0
      %559 = vmatpush1.bf16.msra.mxu0 0
      %560 = vmatprep.subr.bf16.mxu0 0
      %561 = vmatpush1.bf16.msra.mxu0 0
      %562 = vmatprep.subr.bf16.mxu0 0
      %563 = vmatpush1.bf16.msra.mxu0 0
      %564 = vmatprep.subr.bf16.mxu0 0
      %565 = vmatpush1.bf16.msra.mxu0 0
      %566 = vmatprep.subr.bf16.mxu0 0
      %567 = vmatpush1.bf16.msra.mxu0 0
      %568 = vmatprep.subr.bf16.mxu0 0
      %569 = vmatpush1.bf16.msra.mxu0 0
      %570 = vmatprep.mubr.bf16.mxu0 0
      %571 = vmatmul.mubr.bf16.gmra.mrb[0].mxu0 %v533
      %v572 = vpop.f32.mrb[0].mxu0
      %v573 = vadd.f32 0.0, %v572
      %v574 = vpop.f32.mrb[0].mxu0
      %v575 = vadd.f32 0.0, %v574
      %v576 = vpop.f32.mrb[0].mxu0
      %v577 = vadd.f32 0.0, %v576
      %v578 = vpop.f32.mrb[0].mxu0
      %v579 = vadd.f32 0.0, %v578
      %580 = vmatprep.mubr.bf16.mxu0 0
      %581 = vmatmul.mubr.bf16.gmra.mrb[0].mxu0 %v536
      %v582 = vpop.f32.mrb[0].mxu0
      %v583 = vadd.f32 0.0, %v582
      %v584 = vpop.f32.mrb[0].mxu0
      %v585 = vadd.f32 0.0, %v584
      %v586 = vpop.f32.mrb[0].mxu0
      %v587 = vadd.f32 0.0, %v586
      %v588 = vpop.f32.mrb[0].mxu0
      %v589 = vadd.f32 0.0, %v588
      %590 = vdwg.mxu0
      %591 = vst [vmem:[%s197] sm:$0xff] %v573
      %592 = vst [vmem:[%s197 + $0x8] sm:$0xff] %v575
      %593 = vst [vmem:[%s197 + $0x10] sm:$0xff] %v577
      %594 = vst [vmem:[%s197 + $0x18] sm:$0xff] %v579
      %595 = vst [vmem:[%s197 + $0x20] sm:$0xff] %v583
      %596 = vst [vmem:[%s197 + $0x28] sm:$0xff] %v585
      %597 = vst [vmem:[%s197 + $0x30] sm:$0xff] %v587
      %598 = vst [vmem:[%s197 + $0x38] sm:$0xff] %v589
      %p599 = scmp.lt.s32.totalorder %s15, 1
      %s600 = scalar_select %p599, %s15, 1
      %s601 = smul.addr %s600, 8
      %s602 = smul.addr %s601, 8
      %s603 = scalar_lea.vmem %s4, %s602
      // Predicated region
      $region37: #{mha_forward.3} parent=35 // pred_check
        %p604 = pneg %p122
      $region38: #{mha_forward.3} parent=35 // pred_check_branch
        %606 = sbr.rel (%p604) target = $region40
      $region39: #{mha_forward.3} parent=35 // pred_region
        _
      $region40: #{mha_forward.3} parent=35 // pred_fallthru
        _
    $region36: #{mha_forward.3} parent=5 // pred_fallthru
      _
    %p607 = scmp.le.s32.totalorder 2, %s10
    // Predicated region
    $region41: #{mha_forward.3} parent=5 // pred_check
      %p608 = pneg %p607
    $region42: #{mha_forward.3} parent=5 // pred_check_branch
      %610 = sbr.rel (%p608) target = $region44
    $region43: #{mha_forward.3} parent=5 // pred_region
      %s611 = ssub.s32 %s10, 2
      // Predicated region
      $region45: #{mha_forward.3} parent=43 // pred_check
        %p612 = pneg %p128
      $region46: #{mha_forward.3} parent=43 // pred_check_branch
        %614 = sbr.rel (%p612) target = $region48
      $region47: #{mha_forward.3} parent=43 // pred_region
        %p615 = scmp.lt.s32.totalorder %s16, 1
        %s616 = scalar_select %p615, %s16, 1
        %s617 = smul.addr %s616, 8
        %s618 = smul.addr %s617, 8
        %s619 = scalar_lea.vmem %s4, %s618
      $region48: #{mha_forward.3} parent=43 // pred_fallthru
        _
    $region44: #{mha_forward.3} parent=5 // pred_fallthru
      _
  $region6: #{mha_forward.3} parent=0 // loop_footer
    %s14 = sadd.s32 1, %s10
  $region7: #{mha_forward.3} parent=0 // loop_footer_branch
    %9 = sbr.rel target = $region3
  $region8: #{mha_forward.3} parent=0 // loop_exit
    _

// kernel: mha_forward.2
$region0: #{mha_forward.2}
  #allocation0 [shape = 'u32[]', space=smem, size = 0x4, offset = 0x4, fixed_abs, tag = 'smem constant byte address 0x4 - core index']
  #allocation1 [shape = 'u32[144,128]{1,0:T(1,128)}', space=vmem, size = 0x12000, scoped, tag = 'internal scratch']
  %s0 = inlined_call_operand.vmem [shape: bf16[96,32], index: 0, kind: input, shape index: {}]
  %s1 = inlined_call_operand.vmem [shape: f32[96,9], index: 1, kind: input, shape index: {}]
  %s2 = inlined_call_operand.vmem [shape: f32[9,256], index: 2, kind: input, shape index: {}]
  %s3 = inlined_call_operand.vmem [shape: bf16[2,32,256], index: 3, kind: input, shape index: {}]
  %s4 = inlined_call_operand.vmem [shape: bf16[2,96,256], index: 4, kind: output, shape index: {}]
  %s5 = sld [smem:[#allocation0]]
  $region49: #{mha_forward.2} parent=0
    _
  %s7 = ssub.s32 1, %s5
  %s8 = scalar_select 0, %s7, %s5
  loop: start=0, step=1, limit=4
  $region2: #{mha_forward.2} parent=0 // loop_pre_header
    _
  $region3: #{mha_forward.2} parent=0 // loop_header
    %s10 = sphi 0, %s14
    %p11 = scmp.ge.s32.totalorder %s10, 4
    %s17 = sphi 0, %s29
    %s18 = sphi 0, %s25
    %s19 = sphi 0, %s17
    %s20 = sphi 0, %s18
    %s21 = sphi 0, %s19
    %s22 = sphi 0, %s20
    %s32 = sphi 0, %s34
    %s35 = sphi 0, %s32
    %s36 = sphi 0, %s35
    %s52 = sphi 0, %s36
    %s58 = sphi 0, %s60
    %s61 = sphi 0, %s58
    %s62 = sphi 0, %s61
    %s78 = sphi 0, %s62
    %s82 = sphi 0, %s82
    %s84 = sphi 0, %s82
    %s85 = sphi 0, %s84
    %s99 = sphi 0, %s85
    %s105 = sphi 0, %s107
    %s108 = sphi 0, %s105
    %s109 = sphi 0, %s108
    %s125 = sphi 0, %s109
    %s133 = sphi 0, %s135
    %s136 = sphi 0, %s133
    %s137 = sphi 0, %s136
    %s153 = sphi 0, %s137
  $region4: #{mha_forward.2} parent=0 // loop_header_branch
    %13 = sbr.rel (%p11) target = $region8
  $region5: #{mha_forward.2} parent=0 // loop_body
    %s15 = ssub.s32 %s10, 1
    %s16 = ssub.s32 %s10, 2
    %s23 = sadd.s32 1, %s18
    %p24 = scmp.ge.s32.totalorder %s23, 1
    %s25 = scalar_select %p24, 0, %s23
    %s26 = sadd.s32 1, %s17
    %s27 = scalar_select %p24, %s26, %s17
    %p28 = scmp.ge.s32.totalorder %s27, 2
    %s29 = scalar_select %p28, 0, %s27
    %s30 = ssub.s32 %s18, %s25
    %p31 = scmp.eq.s32.totalorder %s30, 0
    %s33 = sadd.s32 %s32, 1
    %s34 = scalar_select %p31, %s32, %s33
    %p37 = pneg %p31
    %p38 = scmp.eq.s32.totalorder %s10, 1
    %p39 = por %p37, %p38
    %p40 = scmp.ne.s32.totalorder %s32, %s35
    %p41 = scmp.eq.s32.totalorder %s10, 0
    %p42 = por %p40, %p41
    %p43 = scmp.ne.s32.totalorder %s32, %s35
    %p44 = scmp.eq.s32.totalorder %s15, 1
    %p45 = por %p43, %p44
    %p46 = scmp.ne.s32.totalorder %s35, %s36
    %p47 = scmp.eq.s32.totalorder %s15, 0
    %p48 = por %p46, %p47
    %p49 = scmp.ne.s32.totalorder %s35, %s36
    %p50 = scmp.eq.s32.totalorder %s16, 1
    %p51 = por %p49, %p50
    %p53 = scmp.ne.s32.totalorder %s36, %s52
    %p54 = scmp.eq.s32.totalorder %s16, 0
    %p55 = por %p53, %p54
    %s56 = ssub.s32 %s18, %s25
    %p57 = scmp.eq.s32.totalorder %s56, 0
    %s59 = sadd.s32 %s58, 1
    %s60 = scalar_select %p57, %s58, %s59
    %p63 = pneg %p57
    %p64 = scmp.eq.s32.totalorder %s10, 1
    %p65 = por %p63, %p64
    %p66 = scmp.ne.s32.totalorder %s58, %s61
    %p67 = scmp.eq.s32.totalorder %s10, 0
    %p68 = por %p66, %p67
    %p69 = scmp.ne.s32.totalorder %s58, %s61
    %p70 = scmp.eq.s32.totalorder %s15, 1
    %p71 = por %p69, %p70
    %p72 = scmp.ne.s32.totalorder %s61, %s62
    %p73 = scmp.eq.s32.totalorder %s15, 0
    %p74 = por %p72, %p73
    %p75 = scmp.ne.s32.totalorder %s61, %s62
    %p76 = scmp.eq.s32.totalorder %s16, 1
    %p77 = por %p75, %p76
    %p79 = scmp.ne.s32.totalorder %s62, %s78
    %p80 = scmp.eq.s32.totalorder %s16, 0
    %p81 = por %p79, %p80
    %s83 = sadd.s32 %s82, 1
    %p86 = scmp.eq.s32.totalorder %s10, 1
    %p87 = scmp.ne.s32.totalorder %s82, %s84
    %p88 = scmp.eq.s32.totalorder %s10, 0
    %p89 = por %p87, %p88
    %p90 = scmp.ne.s32.totalorder %s82, %s84
    %p91 = scmp.eq.s32.totalorder %s15, 1
    %p92 = por %p90, %p91
    %p93 = scmp.ne.s32.totalorder %s84, %s85
    %p94 = scmp.eq.s32.totalorder %s15, 0
    %p95 = por %p93, %p94
    %p96 = scmp.ne.s32.totalorder %s84, %s85
    %p97 = scmp.eq.s32.totalorder %s16, 1
    %p98 = por %p96, %p97
    %p100 = scmp.ne.s32.totalorder %s85, %s99
    %p101 = scmp.eq.s32.totalorder %s16, 0
    %p102 = por %p100, %p101
    %s103 = ssub.s32 %s17, %s29
    %p104 = scmp.eq.s32.totalorder %s103, 0
    %s106 = sadd.s32 %s105, 1
    %s107 = scalar_select %p104, %s105, %s106
    %p110 = pneg %p104
    %p111 = scmp.eq.s32.totalorder %s10, 1
    %p112 = por %p110, %p111
    %p113 = scmp.ne.s32.totalorder %s105, %s108
    %p114 = scmp.eq.s32.totalorder %s10, 0
    %p115 = por %p113, %p114
    %p116 = scmp.ne.s32.totalorder %s105, %s108
    %p117 = scmp.eq.s32.totalorder %s15, 1
    %p118 = por %p116, %p117
    %p119 = scmp.ne.s32.totalorder %s108, %s109
    %p120 = scmp.eq.s32.totalorder %s15, 0
    %p121 = por %p119, %p120
    %p122 = scmp.ne.s32.totalorder %s108, %s109
    %p123 = scmp.eq.s32.totalorder %s16, 1
    %p124 = por %p122, %p123
    %p126 = scmp.ne.s32.totalorder %s109, %s125
    %p127 = scmp.eq.s32.totalorder %s16, 0
    %p128 = por %p126, %p127
    %s129 = ssub.s32 %s17, %s29
    %s130 = ssub.s32 %s18, %s25
    %s131 = sor.u32 %s129, %s130
    %p132 = scmp.eq.s32.totalorder %s131, 0
    %s134 = sadd.s32 %s133, 1
    %s135 = scalar_select %p132, %s133, %s134
    %p138 = pneg %p132
    %p139 = scmp.eq.s32.totalorder %s10, 1
    %p140 = por %p138, %p139
    %p141 = scmp.ne.s32.totalorder %s133, %s136
    %p142 = scmp.eq.s32.totalorder %s10, 0
    %p143 = por %p141, %p142
    %p144 = scmp.ne.s32.totalorder %s133, %s136
    %p145 = scmp.eq.s32.totalorder %s15, 1
    %p146 = por %p144, %p145
    %p147 = scmp.ne.s32.totalorder %s136, %s137
    %p148 = scmp.eq.s32.totalorder %s15, 0
    %p149 = por %p147, %p148
    %p150 = scmp.ne.s32.totalorder %s136, %s137
    %p151 = scmp.eq.s32.totalorder %s16, 1
    %p152 = por %p150, %p151
    %p154 = scmp.ne.s32.totalorder %s137, %s153
    %p155 = scmp.eq.s32.totalorder %s16, 0
    %p156 = por %p154, %p155
    %p157 = scmp.le.s32.totalorder 1, %s10
    %p158 = scmp.lt.s32.totalorder %s10, 3
    %p159 = pnand %p157, %p158
    %p160 = pneg %p159
    // Predicated region
    $region9: #{mha_forward.2} parent=5 // pred_check
      _
    $region10: #{mha_forward.2} parent=5 // pred_check_branch
      %162 = sbr.rel (%p159) target = $region12
    $region11: #{mha_forward.2} parent=5 // pred_region
      %s163 = ssub.s32 %s10, 1
      // Predicated region
      $region13: #{mha_forward.2} parent=11 // pred_check
        %p164 = pneg %p48
      $region14: #{mha_forward.2} parent=11 // pred_check_branch
        %166 = sbr.rel (%p164) target = $region16
      $region15: #{mha_forward.2} parent=11 // pred_region
        %s167 = smul.u32 12, %s20
        %p168 = scmp.lt.s32.totalorder %s167, 11
        %s169 = scalar_select %p168, %s167, 11
        %s170 = smul.addr %s169, 4
        %s171 = scalar_lea.vmem %s0, %s170
        %s172 = smul.u32 12, %s20
      $region16: #{mha_forward.2} parent=11 // pred_fallthru
        _
      // Predicated region
      $region17: #{mha_forward.2} parent=11 // pred_check
        %p173 = pneg %p74
      $region18: #{mha_forward.2} parent=11 // pred_check_branch
        %175 = sbr.rel (%p173) target = $region20
      $region19: #{mha_forward.2} parent=11 // pred_region
        %s176 = smul.u32 12, %s20
        %p177 = scmp.lt.s32.totalorder %s176, 11
        %s178 = scalar_select %p177, %s176, 11
        %s179 = smul.addr %s178, 8
        %s180 = scalar_lea.vmem %s1, %s179
        %s181 = smul.u32 12, %s20
      $region20: #{mha_forward.2} parent=11 // pred_fallthru
        _
      // Predicated region
      $region21: #{mha_forward.2} parent=11 // pred_check
        %p182 = pneg %p95
      $region22: #{mha_forward.2} parent=11 // pred_check_branch
        %184 = sbr.rel (%p182) target = $region24
      $region23: #{mha_forward.2} parent=11 // pred_region
        _
      $region24: #{mha_forward.2} parent=11 // pred_fallthru
        _
    $region12: #{mha_forward.2} parent=5 // pred_fallthru
      _
    %p185 = scmp.lt.s32.totalorder %s10, 2
    // Predicated region
    $region25: #{mha_forward.2} parent=5 // pred_check
      %p186 = pneg %p185
    $region26: #{mha_forward.2} parent=5 // pred_check_branch
      %188 = sbr.rel (%p186) target = $region28
    $region27: #{mha_forward.2} parent=5 // pred_region
      // Predicated region
      $region29: #{mha_forward.2} parent=27 // pred_check
        %p189 = pneg %p115
      $region30: #{mha_forward.2} parent=27 // pred_check_branch
        %191 = sbr.rel (%p189) target = $region32
      $region31: #{mha_forward.2} parent=27 // pred_region
        %p192 = scmp.lt.s32.totalorder %s17, 1
        %s193 = scalar_select %p192, %s17, 1
        %s194 = smul.addr %s193, 8
        %s195 = smul.addr %s194, 4
        %s196 = scalar_lea.vmem %s3, %s195
      $region32: #{mha_forward.2} parent=27 // pred_fallthru
        _
    $region28: #{mha_forward.2} parent=5 // pred_fallthru
      _
    %p197 = scmp.le.s32.totalorder 1, %s10
    %p198 = scmp.lt.s32.totalorder %s10, 3
    %p199 = pnand %p197, %p198
    %p200 = pneg %p199
    // Predicated region
    $region33: #{mha_forward.2} parent=5 // pred_check
      _
    $region34: #{mha_forward.2} parent=5 // pred_check_branch
      %202 = sbr.rel (%p199) target = $region36
    $region35: #{mha_forward.2} parent=5 // pred_region
      %s203 = ssub.s32 %s10, 1
      %s204 = smul.u32 12, %s20
      %p205 = scmp.lt.s32.totalorder %s204, 11
      %s206 = scalar_select %p205, %s204, 11
      %s207 = smul.addr %s206, 4
      %s208 = scalar_lea.vmem %s0, %s207
      %p209 = pneg %p48
      %p210 = pneg %p45
      %s211 = smul.u32 12, %s20
      %p212 = scmp.lt.s32.totalorder %s211, 11
      %s213 = scalar_select %p212, %s211, 11
      %s214 = smul.addr %s213, 8
      %s215 = scalar_lea.vmem %s1, %s214
      %p216 = pneg %p74
      %p217 = pneg %p71
      %p218 = pneg %p95
      %p219 = pneg %p92
      %p220 = scmp.lt.s32.totalorder %s19, 1
      %s221 = scalar_select %p220, %s19, 1
      %s222 = smul.addr %s221, 8
      %s223 = smul.addr %s222, 4
      %s224 = scalar_lea.vmem %s3, %s223
      %p225 = pneg %p121
      %p226 = pneg %p118
      %p227 = pneg %p149
      %p228 = pneg %p146
      %s229 = smul.u32 12, %s20
      %p230 = scmp.lt.s32.totalorder %s19, 1
      %s231 = scalar_select %p230, %s19, 1
      %p232 = scmp.lt.s32.totalorder %s229, 11
      %s233 = scalar_select %p232, %s229, 11
      %s234 = smul.addr %s233, 2
      %s235 = smul.addr %s231, 24
      %s236 = sadd.s32 %s234, %s235
      %s237 = smul.addr %s236, 4
      %s238 = scalar_lea.vmem %s4, %s237
      %s239 = smul.u32 12, %s20
      %p240 = scmp.lt.s32.totalorder %s239, 11
      %s241 = scalar_select %p240, %s239, 11
      %s242 = smul.addr %s241, 4
      %s243 = scalar_lea.vmem %s0, %s242
      %s244 = smul.u32 12, %s20
      %s245 = smul.u32 12, %s20
      %p246 = scmp.lt.s32.totalorder %s245, 11
      %s247 = scalar_select %p246, %s245, 11
      %s248 = smul.addr %s247, 8
      %s249 = scalar_lea.vmem %s1, %s248
      %s250 = smul.u32 12, %s20
      %p251 = scmp.lt.s32.totalorder %s19, 1
      %s252 = scalar_select %p251, %s19, 1
      %s253 = smul.addr %s252, 8
      %s254 = smul.addr %s253, 4
      %s255 = scalar_lea.vmem %s3, %s254
      %s256 = smul.u32 12, %s20
      %p257 = scmp.lt.s32.totalorder %s19, 1
      %s258 = scalar_select %p257, %s19, 1
      %p259 = scmp.lt.s32.totalorder %s256, 11
      %s260 = scalar_select %p259, %s256, 11
      %s261 = smul.addr %s260, 2
      %s262 = smul.addr %s258, 24
      %s263 = sadd.s32 %s261, %s262
      %s264 = smul.addr %s263, 4
      %s265 = scalar_lea.vmem %s4, %s264
      %s266 = smul.u32 12, %s20
      %v268 = vld [vmem:[%s243] sm:$0xf]
      %v269 = vld [vmem:[%s243 + $0x4] sm:$0xf]
      %v270 = vld [vmem:[%s243 + $0x8] sm:$0xf]
      %v271 = vld [vmem:[%s243 + $0xc] sm:$0xf]
      %v272 = vld [vmem:[%s243 + $0x10] sm:$0xf]
      %v273 = vld [vmem:[%s243 + $0x14] sm:$0xf]
      %v274 = vld [vmem:[%s243 + $0x18] sm:$0xf]
      %v275 = vld [vmem:[%s243 + $0x1c] sm:$0xf]
      %v276 = vld [vmem:[%s243 + $0x20] sm:$0xf]
      %v277 = vld [vmem:[%s243 + $0x24] sm:$0xf]
      %v278 = vld [vmem:[%s243 + $0x28] sm:$0xf]
      %v279 = vld [vmem:[%s243 + $0x2c] sm:$0xf]
      %v280 = vld [vmem:[%s255] sm:$0xff]
      %v281 = vld [vmem:[%s255 + $0x8] sm:$0xff]
      %v282 = vld [vmem:[%s255 + $0x10] sm:$0xff]
      %v283 = vld [vmem:[%s255 + $0x18] sm:$0xff]
      %v296 = vunpack.c.l.b16 %v268
      %v297 = vunpack.c.l.b16 %v269
      %v298 = vunpack.c.l.b16 %v270
      %v299 = vunpack.c.l.b16 %v271
      %v300 = vunpack.c.l.b16 %v272
      %v301 = vunpack.c.l.b16 %v273
      %v302 = vunpack.c.l.b16 %v274
      %v303 = vunpack.c.l.b16 %v275
      %v304 = vunpack.c.l.b16 %v276
      %v305 = vunpack.c.l.b16 %v277
      %v306 = vunpack.c.l.b16 %v278
      %v307 = vunpack.c.l.b16 %v279
      %v308 = vpack.c.b16 %v297, %v296
      %v309 = vpack.c.b16 %v299, %v298
      %v310 = vpack.c.b16 %v301, %v300
      %v311 = vpack.c.b16 %v303, %v302
      %v312 = vpack.c.b16 %v305, %v304
      %v313 = vpack.c.b16 %v307, %v306
      %v318 = vunpack.c.l.b16 %v280
      %v319 = vunpack.c.h.b16 %v280
      %v320 = vunpack.c.l.b16 %v281
      %v321 = vunpack.c.h.b16 %v281
      %v322 = vunpack.c.l.b16 %v282
      %v323 = vunpack.c.h.b16 %v282
      %v324 = vunpack.c.l.b16 %v283
      %v325 = vunpack.c.h.b16 %v283
      %v326 = vpack.c.b16 %v320, %v318
      %v327 = vpack.c.b16 %v321, %v319
      %v328 = vpack.c.b16 %v324, %v322
      %v329 = vpack.c.b16 %v325, %v323
      %vm334 = vcmask 261120
      %v336 = vsel %vm334, %v308, 0
      %v339 = vsel %vm334, %v309, 0
      %v342 = vsel %vm334, %v310, 0
      %v345 = vsel %vm334, %v311, 0
      %v348 = vsel %vm334, %v312, 0
      %v351 = vsel %vm334, %v313, 0
      %353 = vmatprep.subr.bf16.mxu0 %v327
      %354 = vmatpush1.bf16.msra.mxu0 %v326
      %355 = vmatprep.subr.bf16.mxu0 %v329
      %356 = vmatpush1.bf16.msra.mxu0 %v328
      %357 = vmatprep.subr.bf16.mxu0 0
      %358 = vmatpush1.bf16.msra.mxu0 0
      %359 = vmatprep.subr.bf16.mxu0 0
      %360 = vmatpush1.bf16.msra.mxu0 0
      %361 = vmatprep.subr.bf16.mxu0 0
      %362 = vmatpush1.bf16.msra.mxu0 0
      %363 = vmatprep.subr.bf16.mxu0 0
      %364 = vmatpush1.bf16.msra.mxu0 0
      %365 = vmatprep.subr.bf16.mxu0 0
      %366 = vmatpush1.bf16.msra.mxu0 0
      %367 = vmatprep.subr.bf16.mxu0 0
      %368 = vmatpush1.bf16.msra.mxu0 0
      %369 = vmatprep.subr.bf16.mxu0 0
      %370 = vmatpush1.bf16.msra.mxu0 0
      %371 = vmatprep.subr.bf16.mxu0 0
      %372 = vmatpush1.bf16.msra.mxu0 0
      %373 = vmatprep.subr.bf16.mxu0 0
      %374 = vmatpush1.bf16.msra.mxu0 0
      %375 = vmatprep.subr.bf16.mxu0 0
      %376 = vmatpush1.bf16.msra.mxu0 0
      %377 = vmatprep.subr.bf16.mxu0 0
      %378 = vmatpush1.bf16.msra.mxu0 0
      %379 = vmatprep.subr.bf16.mxu0 0
      %380 = vmatpush1.bf16.msra.mxu0 0
      %381 = vmatprep.subr.bf16.mxu0 0
      %382 = vmatpush1.bf16.msra.mxu0 0
      %383 = vmatprep.subr.bf16.mxu0 0
      %384 = vmatpush1.bf16.msra.mxu0 0
      %385 = vmatprep.mubr.bf16.mxu0 0
      %386 = vmatmul.mubr.bf16.gmra.mrb[0].mxu0 %v336
      %v387 = vpop.f32.mrb[0].mxu0
      %v388 = vadd.f32 0.0, %v387
      %v389 = vpop.f32.mrb[0].mxu0
      %v390 = vadd.f32 0.0, %v389
      %v391 = vpop.f32.mrb[0].mxu0
      %v392 = vadd.f32 0.0, %v391
      %v393 = vpop.f32.mrb[0].mxu0
      %v394 = vadd.f32 0.0, %v393
      %395 = vmatprep.mubr.bf16.mxu0 0
      %396 = vmatmul.mubr.bf16.gmra.mrb[0].mxu0 %v339
      %v397 = vpop.f32.mrb[0].mxu0
      %v398 = vadd.f32 0.0, %v397
      %v399 = vpop.f32.mrb[0].mxu0
      %v400 = vadd.f32 0.0, %v399
      %v401 = vpop.f32.mrb[0].mxu0
      %v402 = vadd.f32 0.0, %v401
      %v403 = vpop.f32.mrb[0].mxu0
      %v404 = vadd.f32 0.0, %v403
      %405 = vmatprep.mubr.bf16.mxu0 0
      %406 = vmatmul.mubr.bf16.gmra.mrb[0].mxu0 %v342
      %v407 = vpop.f32.mrb[0].mxu0
      %v408 = vadd.f32 0.0, %v407
      %v409 = vpop.f32.mrb[0].mxu0
      %v410 = vadd.f32 0.0, %v409
      %v411 = vpop.f32.mrb[0].mxu0
      %v412 = vadd.f32 0.0, %v411
      %v413 = vpop.f32.mrb[0].mxu0
      %v414 = vadd.f32 0.0, %v413
      %415 = vmatprep.mubr.bf16.mxu0 0
      %416 = vmatmul.mubr.bf16.gmra.mrb[0].mxu0 %v345
      %v417 = vpop.f32.mrb[0].mxu0
      %v418 = vadd.f32 0.0, %v417
      %v419 = vpop.f32.mrb[0].mxu0
      %v420 = vadd.f32 0.0, %v419
      %v421 = vpop.f32.mrb[0].mxu0
      %v422 = vadd.f32 0.0, %v421
      %v423 = vpop.f32.mrb[0].mxu0
      %v424 = vadd.f32 0.0, %v423
      %425 = vmatprep.mubr.bf16.mxu0 0
      %426 = vmatmul.mubr.bf16.gmra.mrb[0].mxu0 %v348
      %v427 = vpop.f32.mrb[0].mxu0
      %v428 = vadd.f32 0.0, %v427
      %v429 = vpop.f32.mrb[0].mxu0
      %v430 = vadd.f32 0.0, %v429
      %v431 = vpop.f32.mrb[0].mxu0
      %v432 = vadd.f32 0.0, %v431
      %v433 = vpop.f32.mrb[0].mxu0
      %v434 = vadd.f32 0.0, %v433
      %435 = vmatprep.mubr.bf16.mxu0 0
      %436 = vmatmul.mubr.bf16.gmra.mrb[0].mxu0 %v351
      %v437 = vpop.f32.mrb[0].mxu0
      %v438 = vadd.f32 0.0, %v437
      %v439 = vpop.f32.mrb[0].mxu0
      %v440 = vadd.f32 0.0, %v439
      %v441 = vpop.f32.mrb[0].mxu0
      %v442 = vadd.f32 0.0, %v441
      %v443 = vpop.f32.mrb[0].mxu0
      %v444 = vadd.f32 0.0, %v443
      %445 = vdwg.mxu0
      %v446 = vld [vmem:[%s249] sm:$0xff]
      %v447 = vld [vmem:[%s249 + $0x8] sm:$0xff]
      %v448 = vld [vmem:[%s249 + $0x10] sm:$0xff]
      %v449 = vld [vmem:[%s249 + $0x18] sm:$0xff]
      %v450 = vld [vmem:[%s249 + $0x20] sm:$0xff]
      %v451 = vld [vmem:[%s249 + $0x28] sm:$0xff]
      %v452 = vld [vmem:[%s249 + $0x30] sm:$0xff]
      %v453 = vld [vmem:[%s249 + $0x38] sm:$0xff]
      %v454 = vld [vmem:[%s249 + $0x40] sm:$0xff]
      %v455 = vld [vmem:[%s249 + $0x48] sm:$0xff]
      %v456 = vld [vmem:[%s249 + $0x50] sm:$0xff]
      %v457 = vld [vmem:[%s249 + $0x58] sm:$0xff]
      %v458 = vld [vmem:[%s2] sm:$0xff]
      %v459 = vld [vmem:[%s2 + $0x8] sm:$0xff]
      %v460 = vld [vmem:[%s2 + $0x10] sm:$0x1]
      %v461 = vld [vmem:[%s2 + $0x18] sm:$0x1]
      %463 = vset.pattern.permute.xlu0 4
      %464 = vperm.xlu0 %463, %v446
      %v465 = vpop.permute.xlu0 %464
      %468 = vset.pattern.permute.xlu0 4
      %469 = vperm.xlu0 %468, %v447
      %v470 = vpop.permute.xlu0 %469
      %473 = vset.pattern.permute.xlu0 4
      %474 = vperm.xlu0 %473, %v448
      %v475 = vpop.permute.xlu0 %474
      %478 = vset.pattern.permute.xlu0 4
      %479 = vperm.xlu0 %478, %v449
      %v480 = vpop.permute.xlu0 %479
      %483 = vset.pattern.permute.xlu0 4
      %484 = vperm.xlu0 %483, %v450
      %v485 = vpop.permute.xlu0 %484
      %488 = vset.pattern.permute.xlu0 4
      %489 = vperm.xlu0 %488, %v451
      %v490 = vpop.permute.xlu0 %489
      %493 = vset.pattern.permute.xlu0 4
      %494 = vperm.xlu0 %493, %v452
      %v495 = vpop.permute.xlu0 %494
      %498 = vset.pattern.permute.xlu0 4
      %499 = vperm.xlu0 %498, %v453
      %v500 = vpop.permute.xlu0 %499
      %503 = vset.pattern.permute.xlu0 4
      %504 = vperm.xlu0 %503, %v454
      %v505 = vpop.permute.xlu0 %504
      %508 = vset.pattern.permute.xlu0 4
      %509 = vperm.xlu0 %508, %v455
      %v510 = vpop.permute.xlu0 %509
      %513 = vset.pattern.permute.xlu0 4
      %514 = vperm.xlu0 %513, %v456
      %v515 = vpop.permute.xlu0 %514
      %518 = vset.pattern.permute.xlu0 4
      %519 = vperm.xlu0 %518, %v457
      %v520 = vpop.permute.xlu0 %519
      %v522 = vmul.f32 %v465, %v388
      %v523 = vmul.f32 %v465, %v390
      %v524 = vmul.f32 %v470, %v392
      %v525 = vmul.f32 %v470, %v394
      %v526 = vmul.f32 %v475, %v398
      %v527 = vmul.f32 %v475, %v400
      %v528 = vmul.f32 %v480, %v402
      %v529 = vmul.f32 %v480, %v404
      %v530 = vmul.f32 %v485, %v408
      %v531 = vmul.f32 %v485, %v410
      %v532 = vmul.f32 %v490, %v412
      %v533 = vmul.f32 %v490, %v414
      %v534 = vmul.f32 %v495, %v418
      %v535 = vmul.f32 %v495, %v420
      %v536 = vmul.f32 %v500, %v422
      %v537 = vmul.f32 %v500, %v424
      %v538 = vmul.f32 %v505, %v428
      %v539 = vmul.f32 %v505, %v430
      %v540 = vmul.f32 %v510, %v432
      %v541 = vmul.f32 %v510, %v434
      %v542 = vmul.f32 %v515, %v438
      %v543 = vmul.f32 %v515, %v440
      %v544 = vmul.f32 %v520, %v442
      %v545 = vmul.f32 %v520, %v444
      %546 = vrot.lane.b32.xlu0 %v388, 17
      %v547 = vpop.permute.xlu0 %546
      %548 = vrot.lane.b32.xlu0 %v392, 17
      %v549 = vpop.permute.xlu0 %548
      %550 = vrot.lane.b32.xlu0 %v398, 17
      %v551 = vpop.permute.xlu0 %550
      %552 = vrot.lane.b32.xlu0 %v402, 17
      %v553 = vpop.permute.xlu0 %552
      %554 = vrot.lane.b32.xlu0 %v408, 17
      %v555 = vpop.permute.xlu0 %554
      %556 = vrot.lane.b32.xlu0 %v412, 17
      %v557 = vpop.permute.xlu0 %556
      %558 = vrot.lane.b32.xlu0 %v418, 17
      %v559 = vpop.permute.xlu0 %558
      %560 = vrot.lane.b32.xlu0 %v422, 17
      %v561 = vpop.permute.xlu0 %560
      %562 = vrot.lane.b32.xlu0 %v428, 17
      %v563 = vpop.permute.xlu0 %562
      %564 = vrot.lane.b32.xlu0 %v432, 17
      %v565 = vpop.permute.xlu0 %564
      %566 = vrot.lane.b32.xlu0 %v438, 17
      %v567 = vpop.permute.xlu0 %566
      %568 = vrot.lane.b32.xlu0 %v442, 17
      %v569 = vpop.permute.xlu0 %568
      %570 = vrot.lane.b32.xlu0 %v390, 17
      %v571 = vpop.permute.xlu0 %570
      %572 = vrot.lane.b32.xlu0 %v394, 17
      %v573 = vpop.permute.xlu0 %572
      %574 = vrot.lane.b32.xlu0 %v400, 17
      %v575 = vpop.permute.xlu0 %574
      %576 = vrot.lane.b32.xlu0 %v404, 17
      %v577 = vpop.permute.xlu0 %576
      %578 = vrot.lane.b32.xlu0 %v410, 17
      %v579 = vpop.permute.xlu0 %578
      %580 = vrot.lane.b32.xlu0 %v414, 17
      %v581 = vpop.permute.xlu0 %580
      %582 = vrot.lane.b32.xlu0 %v420, 17
      %v583 = vpop.permute.xlu0 %582
      %584 = vrot.lane.b32.xlu0 %v424, 17
      %v585 = vpop.permute.xlu0 %584
      %586 = vrot.lane.b32.xlu0 %v430, 17
      %v587 = vpop.permute.xlu0 %586
      %588 = vrot.lane.b32.xlu0 %v434, 17
      %v589 = vpop.permute.xlu0 %588
      %590 = vrot.lane.b32.xlu0 %v440, 17
      %v591 = vpop.permute.xlu0 %590
      %592 = vrot.lane.b32.xlu0 %v444, 17
      %v593 = vpop.permute.xlu0 %592
      %v594 = vlaneseq
      %v595 = vand.u32 %v594, 127
      %vm596 = vcmp.lt.s32.totalorder %v595, 17
      %v597 = vsel %vm596, %v547, %v571
      %v598 = vsel %vm596, %v549, %v573
      %v599 = vsel %vm596, %v551, %v575
      %v600 = vsel %vm596, %v553, %v577
      %v601 = vsel %vm596, %v555, %v579
      %v602 = vsel %vm596, %v557, %v581
      %v603 = vsel %vm596, %v559, %v583
      %v604 = vsel %vm596, %v561, %v585
      %v605 = vsel %vm596, %v563, %v587
      %v606 = vsel %vm596, %v565, %v589
      %v607 = vsel %vm596, %v567, %v591
      %v608 = vsel %vm596, %v569, %v593
      %v609 = vsel %vm596, %v571, %v547
      %v610 = vsel %vm596, %v573, %v549
      %v611 = vsel %vm596, %v575, %v551
      %v612 = vsel %vm596, %v577, %v553
      %v613 = vsel %vm596, %v579, %v555
      %v614 = vsel %vm596, %v581, %v557
      %v615 = vsel %vm596, %v583, %v559
      %v616 = vsel %vm596, %v585, %v561
      %v617 = vsel %vm596, %v587, %v563
      %v618 = vsel %vm596, %v589, %v565
      %v619 = vsel %vm596, %v591, %v567
      %v620 = vsel %vm596, %v593, %v569
      %v621 = vlaneseq
      %v622 = vshrl.u32 %v621, 7
      %v623 = vsub.s32 0, %v622
      %v624 = vrot.slane %v458, %v623
      %v625 = vlaneseq
      %v626 = vshrl.u32 %v625, 7
      %v627 = vsub.s32 0, %v626
      %v628 = vrot.slane %v459, %v627
      %v629 = vmul.f32 %v609, %v624
      %v630 = vmul.f32 %v597, %v628
      %v631 = vmul.f32 %v610, %v624
      %v632 = vmul.f32 %v598, %v628
      %v633 = vmul.f32 %v611, %v624
      %v634 = vmul.f32 %v599, %v628
      %v635 = vmul.f32 %v612, %v624
      %v636 = vmul.f32 %v600, %v628
      %v637 = vmul.f32 %v613, %v624
      %v638 = vmul.f32 %v601, %v628
      %v639 = vmul.f32 %v614, %v624
      %v640 = vmul.f32 %v602, %v628
      %v641 = vmul.f32 %v615, %v624
      %v642 = vmul.f32 %v603, %v628
      %v643 = vmul.f32 %v616, %v624
      %v644 = vmul.f32 %v604, %v628
      %v645 = vmul.f32 %v617, %v624
      %v646 = vmul.f32 %v605, %v628
      %v647 = vmul.f32 %v618, %v624
      %v648 = vmul.f32 %v606, %v628
      %v649 = vmul.f32 %v619, %v624
      %v650 = vmul.f32 %v607, %v628
      %v651 = vmul.f32 %v620, %v624
      %v652 = vmul.f32 %v608, %v628
      %653 = vset.pattern.permute.xlu0 0
      %654 = vperm.xlu0 %653, %v446
      %v655 = vpop.permute.xlu0 %654
      %657 = vset.pattern.permute.xlu0 0
      %658 = vperm.xlu0 %657, %v447
      %v659 = vpop.permute.xlu0 %658
      %661 = vset.pattern.permute.xlu0 0
      %662 = vperm.xlu0 %661, %v448
      %v663 = vpop.permute.xlu0 %662
      %665 = vset.pattern.permute.xlu0 0
      %666 = vperm.xlu0 %665, %v449
      %v667 = vpop.permute.xlu0 %666
      %669 = vset.pattern.permute.xlu0 0
      %670 = vperm.xlu0 %669, %v450
      %v671 = vpop.permute.xlu0 %670
      %673 = vset.pattern.permute.xlu0 0
      %674 = vperm.xlu0 %673, %v451
      %v675 = vpop.permute.xlu0 %674
      %677 = vset.pattern.permute.xlu0 0
      %678 = vperm.xlu0 %677, %v452
      %v679 = vpop.permute.xlu0 %678
      %681 = vset.pattern.permute.xlu0 0
      %682 = vperm.xlu0 %681, %v453
      %v683 = vpop.permute.xlu0 %682
      %685 = vset.pattern.permute.xlu0 0
      %686 = vperm.xlu0 %685, %v454
      %v687 = vpop.permute.xlu0 %686
      %689 = vset.pattern.permute.xlu0 0
      %690 = vperm.xlu0 %689, %v455
      %v691 = vpop.permute.xlu0 %690
      %693 = vset.pattern.permute.xlu0 0
      %694 = vperm.xlu0 %693, %v456
      %v695 = vpop.permute.xlu0 %694
      %697 = vset.pattern.permute.xlu0 0
      %698 = vperm.xlu0 %697, %v457
      %v699 = vpop.permute.xlu0 %698
      %v701 = vmul.f32 %v655, %v629
      %v702 = vmul.f32 %v655, %v630
      %v703 = vmul.f32 %v659, %v631
      %v704 = vmul.f32 %v659, %v632
      %v705 = vmul.f32 %v663, %v633
      %v706 = vmul.f32 %v663, %v634
      %v707 = vmul.f32 %v667, %v635
      %v708 = vmul.f32 %v667, %v636
      %v709 = vmul.f32 %v671, %v637
      %v710 = vmul.f32 %v671, %v638
      %v711 = vmul.f32 %v675, %v639
      %v712 = vmul.f32 %v675, %v640
      %v713 = vmul.f32 %v679, %v641
      %v714 = vmul.f32 %v679, %v642
      %v715 = vmul.f32 %v683, %v643
      %v716 = vmul.f32 %v683, %v644
      %v717 = vmul.f32 %v687, %v645
      %v718 = vmul.f32 %v687, %v646
      %v719 = vmul.f32 %v691, %v647
      %v720 = vmul.f32 %v691, %v648
      %v721 = vmul.f32 %v695, %v649
      %v722 = vmul.f32 %v695, %v650
      %v723 = vmul.f32 %v699, %v651
      %v724 = vmul.f32 %v699, %v652
      %v725 = vadd.f32 %v522, %v701
      %v726 = vadd.f32 %v523, %v702
      %v727 = vadd.f32 %v524, %v703
      %v728 = vadd.f32 %v525, %v704
      %v729 = vadd.f32 %v526, %v705
      %v730 = vadd.f32 %v527, %v706
      %v731 = vadd.f32 %v528, %v707
      %v732 = vadd.f32 %v529, %v708
      %v733 = vadd.f32 %v530, %v709
      %v734 = vadd.f32 %v531, %v710
      %v735 = vadd.f32 %v532, %v711
      %v736 = vadd.f32 %v533, %v712
      %v737 = vadd.f32 %v534, %v713
      %v738 = vadd.f32 %v535, %v714
      %v739 = vadd.f32 %v536, %v715
      %v740 = vadd.f32 %v537, %v716
      %v741 = vadd.f32 %v538, %v717
      %v742 = vadd.f32 %v539, %v718
      %v743 = vadd.f32 %v540, %v719
      %v744 = vadd.f32 %v541, %v720
      %v745 = vadd.f32 %v542, %v721
      %v746 = vadd.f32 %v543, %v722
      %v747 = vadd.f32 %v544, %v723
      %v748 = vadd.f32 %v545, %v724
      %749 = vrot.lane.b32.xlu0 %v388, 16
      %v750 = vpop.permute.xlu0 %749
      %751 = vrot.lane.b32.xlu0 %v392, 16
      %v752 = vpop.permute.xlu0 %751
      %753 = vrot.lane.b32.xlu0 %v398, 16
      %v754 = vpop.permute.xlu0 %753
      %755 = vrot.lane.b32.xlu0 %v402, 16
      %v756 = vpop.permute.xlu0 %755
      %757 = vrot.lane.b32.xlu0 %v408, 16
      %v758 = vpop.permute.xlu0 %757
      %759 = vrot.lane.b32.xlu0 %v412, 16
      %v760 = vpop.permute.xlu0 %759
      %761 = vrot.lane.b32.xlu0 %v418, 16
      %v762 = vpop.permute.xlu0 %761
      %763 = vrot.lane.b32.xlu0 %v422, 16
      %v764 = vpop.permute.xlu0 %763
      %765 = vrot.lane.b32.xlu0 %v428, 16
      %v766 = vpop.permute.xlu0 %765
      %767 = vrot.lane.b32.xlu0 %v432, 16
      %v768 = vpop.permute.xlu0 %767
      %769 = vrot.lane.b32.xlu0 %v438, 16
      %v770 = vpop.permute.xlu0 %769
      %771 = vrot.lane.b32.xlu0 %v442, 16
      %v772 = vpop.permute.xlu0 %771
      %773 = vrot.lane.b32.xlu0 %v390, 16
      %v774 = vpop.permute.xlu0 %773
      %775 = vrot.lane.b32.xlu0 %v394, 16
      %v776 = vpop.permute.xlu0 %775
      %777 = vrot.lane.b32.xlu0 %v400, 16
      %v778 = vpop.permute.xlu0 %777
      %779 = vrot.lane.b32.xlu0 %v404, 16
      %v780 = vpop.permute.xlu0 %779
      %781 = vrot.lane.b32.xlu0 %v410, 16
      %v782 = vpop.permute.xlu0 %781
      %783 = vrot.lane.b32.xlu0 %v414, 16
      %v784 = vpop.permute.xlu0 %783
      %785 = vrot.lane.b32.xlu0 %v420, 16
      %v786 = vpop.permute.xlu0 %785
      %787 = vrot.lane.b32.xlu0 %v424, 16
      %v788 = vpop.permute.xlu0 %787
      %789 = vrot.lane.b32.xlu0 %v430, 16
      %v790 = vpop.permute.xlu0 %789
      %791 = vrot.lane.b32.xlu0 %v434, 16
      %v792 = vpop.permute.xlu0 %791
      %793 = vrot.lane.b32.xlu0 %v440, 16
      %v794 = vpop.permute.xlu0 %793
      %795 = vrot.lane.b32.xlu0 %v444, 16
      %v796 = vpop.permute.xlu0 %795
      %vm797 = vcmp.lt.s32.totalorder %v595, 16
      %v798 = vsel %vm797, %v750, %v774
      %v799 = vsel %vm797, %v752, %v776
      %v800 = vsel %vm797, %v754, %v778
      %v801 = vsel %vm797, %v756, %v780
      %v802 = vsel %vm797, %v758, %v782
      %v803 = vsel %vm797, %v760, %v784
      %v804 = vsel %vm797, %v762, %v786
      %v805 = vsel %vm797, %v764, %v788
      %v806 = vsel %vm797, %v766, %v790
      %v807 = vsel %vm797, %v768, %v792
      %v808 = vsel %vm797, %v770, %v794
      %v809 = vsel %vm797, %v772, %v796
      %v810 = vsel %vm797, %v774, %v750
      %v811 = vsel %vm797, %v776, %v752
      %v812 = vsel %vm797, %v778, %v754
      %v813 = vsel %vm797, %v780, %v756
      %v814 = vsel %vm797, %v782, %v758
      %v815 = vsel %vm797, %v784, %v760
      %v816 = vsel %vm797, %v786, %v762
      %v817 = vsel %vm797, %v788, %v764
      %v818 = vsel %vm797, %v790, %v766
      %v819 = vsel %vm797, %v792, %v768
      %v820 = vsel %vm797, %v794, %v770
      %v821 = vsel %vm797, %v796, %v772
      %v822 = vlaneseq
      %v823 = vshrl.u32 %v822, 7
      %v824 = vsub.s32 1, %v823
      %v825 = vrot.slane %v458, %v824
      %v826 = vlaneseq
      %v827 = vshrl.u32 %v826, 7
      %v828 = vsub.s32 1, %v827
      %v829 = vrot.slane %v459, %v828
      %v830 = vmul.f32 %v810, %v825
      %v831 = vmul.f32 %v798, %v829
      %v832 = vmul.f32 %v811, %v825
      %v833 = vmul.f32 %v799, %v829
      %v834 = vmul.f32 %v812, %v825
      %v835 = vmul.f32 %v800, %v829
      %v836 = vmul.f32 %v813, %v825
      %v837 = vmul.f32 %v801, %v829
      %v838 = vmul.f32 %v814, %v825
      %v839 = vmul.f32 %v802, %v829
      %v840 = vmul.f32 %v815, %v825
      %v841 = vmul.f32 %v803, %v829
      %v842 = vmul.f32 %v816, %v825
      %v843 = vmul.f32 %v804, %v829
      %v844 = vmul.f32 %v817, %v825
      %v845 = vmul.f32 %v805, %v829
      %v846 = vmul.f32 %v818, %v825
      %v847 = vmul.f32 %v806, %v829
      %v848 = vmul.f32 %v819, %v825
      %v849 = vmul.f32 %v807, %v829
      %v850 = vmul.f32 %v820, %v825
      %v851 = vmul.f32 %v808, %v829
      %v852 = vmul.f32 %v821, %v825
      %v853 = vmul.f32 %v809, %v829
      %854 = vset.pattern.permute.xlu0 1
      %855 = vperm.xlu0 %854, %v446
      %v856 = vpop.permute.xlu0 %855
      %858 = vset.pattern.permute.xlu0 1
      %859 = vperm.xlu0 %858, %v447
      %v860 = vpop.permute.xlu0 %859
      %862 = vset.pattern.permute.xlu0 1
      %863 = vperm.xlu0 %862, %v448
      %v864 = vpop.permute.xlu0 %863
      %866 = vset.pattern.permute.xlu0 1
      %867 = vperm.xlu0 %866, %v449
      %v868 = vpop.permute.xlu0 %867
      %870 = vset.pattern.permute.xlu0 1
      %871 = vperm.xlu0 %870, %v450
      %v872 = vpop.permute.xlu0 %871
      %874 = vset.pattern.permute.xlu0 1
      %875 = vperm.xlu0 %874, %v451
      %v876 = vpop.permute.xlu0 %875
      %878 = vset.pattern.permute.xlu0 1
      %879 = vperm.xlu0 %878, %v452
      %v880 = vpop.permute.xlu0 %879
      %882 = vset.pattern.permute.xlu0 1
      %883 = vperm.xlu0 %882, %v453
      %v884 = vpop.permute.xlu0 %883
      %886 = vset.pattern.permute.xlu0 1
      %887 = vperm.xlu0 %886, %v454
      %v888 = vpop.permute.xlu0 %887
      %890 = vset.pattern.permute.xlu0 1
      %891 = vperm.xlu0 %890, %v455
      %v892 = vpop.permute.xlu0 %891
      %894 = vset.pattern.permute.xlu0 1
      %895 = vperm.xlu0 %894, %v456
      %v896 = vpop.permute.xlu0 %895
      %898 = vset.pattern.permute.xlu0 1
      %899 = vperm.xlu0 %898, %v457
      %v900 = vpop.permute.xlu0 %899
      %v902 = vmul.f32 %v856, %v830
      %v903 = vmul.f32 %v856, %v831
      %v904 = vmul.f32 %v860, %v832
      %v905 = vmul.f32 %v860, %v833
      %v906 = vmul.f32 %v864, %v834
      %v907 = vmul.f32 %v864, %v835
      %v908 = vmul.f32 %v868, %v836
      %v909 = vmul.f32 %v868, %v837
      %v910 = vmul.f32 %v872, %v838
      %v911 = vmul.f32 %v872, %v839
      %v912 = vmul.f32 %v876, %v840
      %v913 = vmul.f32 %v876, %v841
      %v914 = vmul.f32 %v880, %v842
      %v915 = vmul.f32 %v880, %v843
      %v916 = vmul.f32 %v884, %v844
      %v917 = vmul.f32 %v884, %v845
      %v918 = vmul.f32 %v888, %v846
      %v919 = vmul.f32 %v888, %v847
      %v920 = vmul.f32 %v892, %v848
      %v921 = vmul.f32 %v892, %v849
      %v922 = vmul.f32 %v896, %v850
      %v923 = vmul.f32 %v896, %v851
      %v924 = vmul.f32 %v900, %v852
      %v925 = vmul.f32 %v900, %v853
      %v926 = vadd.f32 %v725, %v902
      %v927 = vadd.f32 %v726, %v903
      %v928 = vadd.f32 %v727, %v904
      %v929 = vadd.f32 %v728, %v905
      %v930 = vadd.f32 %v729, %v906
      %v931 = vadd.f32 %v730, %v907
      %v932 = vadd.f32 %v731, %v908
      %v933 = vadd.f32 %v732, %v909
      %v934 = vadd.f32 %v733, %v910
      %v935 = vadd.f32 %v734, %v911
      %v936 = vadd.f32 %v735, %v912
      %v937 = vadd.f32 %v736, %v913
      %v938 = vadd.f32 %v737, %v914
      %v939 = vadd.f32 %v738, %v915
      %v940 = vadd.f32 %v739, %v916
      %v941 = vadd.f32 %v740, %v917
      %v942 = vadd.f32 %v741, %v918
      %v943 = vadd.f32 %v742, %v919
      %v944 = vadd.f32 %v743, %v920
      %v945 = vadd.f32 %v744, %v921
      %v946 = vadd.f32 %v745, %v922
      %v947 = vadd.f32 %v746, %v923
      %v948 = vadd.f32 %v747, %v924
      %v949 = vadd.f32 %v748, %v925
      %950 = vrot.lane.b32.xlu0 %v388, 15
      %v951 = vpop.permute.xlu0 %950
      %952 = vrot.lane.b32.xlu0 %v392, 15
      %v953 = vpop.permute.xlu0 %952
      %954 = vrot.lane.b32.xlu0 %v398, 15
      %v955 = vpop.permute.xlu0 %954
      %956 = vrot.lane.b32.xlu0 %v402, 15
      %v957 = vpop.permute.xlu0 %956
      %958 = vrot.lane.b32.xlu0 %v408, 15
      %v959 = vpop.permute.xlu0 %958
      %960 = vrot.lane.b32.xlu0 %v412, 15
      %v961 = vpop.permute.xlu0 %960
      %962 = vrot.lane.b32.xlu0 %v418, 15
      %v963 = vpop.permute.xlu0 %962
      %964 = vrot.lane.b32.xlu0 %v422, 15
      %v965 = vpop.permute.xlu0 %964
      %966 = vrot.lane.b32.xlu0 %v428, 15
      %v967 = vpop.permute.xlu0 %966
      %968 = vrot.lane.b32.xlu0 %v432, 15
      %v969 = vpop.permute.xlu0 %968
      %970 = vrot.lane.b32.xlu0 %v438, 15
      %v971 = vpop.permute.xlu0 %970
      %972 = vrot.lane.b32.xlu0 %v442, 15
      %v973 = vpop.permute.xlu0 %972
      %974 = vrot.lane.b32.xlu0 %v390, 15
      %v975 = vpop.permute.xlu0 %974
      %976 = vrot.lane.b32.xlu0 %v394, 15
      %v977 = vpop.permute.xlu0 %976
      %978 = vrot.lane.b32.xlu0 %v400, 15
      %v979 = vpop.permute.xlu0 %978
      %980 = vrot.lane.b32.xlu0 %v404, 15
      %v981 = vpop.permute.xlu0 %980
      %982 = vrot.lane.b32.xlu0 %v410, 15
      %v983 = vpop.permute.xlu0 %982
      %984 = vrot.lane.b32.xlu0 %v414, 15
      %v985 = vpop.permute.xlu0 %984
      %986 = vrot.lane.b32.xlu0 %v420, 15
      %v987 = vpop.permute.xlu0 %986
      %988 = vrot.lane.b32.xlu0 %v424, 15
      %v989 = vpop.permute.xlu0 %988
      %990 = vrot.lane.b32.xlu0 %v430, 15
      %v991 = vpop.permute.xlu0 %990
      %992 = vrot.lane.b32.xlu0 %v434, 15
      %v993 = vpop.permute.xlu0 %992
      %994 = vrot.lane.b32.xlu0 %v440, 15
      %v995 = vpop.permute.xlu0 %994
      %996 = vrot.lane.b32.xlu0 %v444, 15
      %v997 = vpop.permute.xlu0 %996
      %vm998 = vcmp.lt.s32.totalorder %v595, 15
      %v999 = vsel %vm998, %v951, %v975
      %v1000 = vsel %vm998, %v953, %v977
      %v1001 = vsel %vm998, %v955, %v979
      %v1002 = vsel %vm998, %v957, %v981
      %v1003 = vsel %vm998, %v959, %v983
      %v1004 = vsel %vm998, %v961, %v985
      %v1005 = vsel %vm998, %v963, %v987
      %v1006 = vsel %vm998, %v965, %v989
      %v1007 = vsel %vm998, %v967, %v991
      %v1008 = vsel %vm998, %v969, %v993
      %v1009 = vsel %vm998, %v971, %v995
      %v1010 = vsel %vm998, %v973, %v997
      %v1011 = vsel %vm998, %v975, %v951
      %v1012 = vsel %vm998, %v977, %v953
      %v1013 = vsel %vm998, %v979, %v955
      %v1014 = vsel %vm998, %v981, %v957
      %v1015 = vsel %vm998, %v983, %v959
      %v1016 = vsel %vm998, %v985, %v961
      %v1017 = vsel %vm998, %v987, %v963
      %v1018 = vsel %vm998, %v989, %v965
      %v1019 = vsel %vm998, %v991, %v967
      %v1020 = vsel %vm998, %v993, %v969
      %v1021 = vsel %vm998, %v995, %v971
      %v1022 = vsel %vm998, %v997, %v973
      %v1023 = vlaneseq
      %v1024 = vshrl.u32 %v1023, 7
      %v1025 = vsub.s32 2, %v1024
      %v1026 = vrot.slane %v458, %v1025
      %v1027 = vlaneseq
      %v1028 = vshrl.u32 %v1027, 7
      %v1029 = vsub.s32 2, %v1028
      %v1030 = vrot.slane %v459, %v1029
      %v1031 = vmul.f32 %v1011, %v1026
      %v1032 = vmul.f32 %v999, %v1030
      %v1033 = vmul.f32 %v1012, %v1026
      %v1034 = vmul.f32 %v1000, %v1030
      %v1035 = vmul.f32 %v1013, %v1026
      %v1036 = vmul.f32 %v1001, %v1030
      %v1037 = vmul.f32 %v1014, %v1026
      %v1038 = vmul.f32 %v1002, %v1030
      %v1039 = vmul.f32 %v1015, %v1026
      %v1040 = vmul.f32 %v1003, %v1030
      %v1041 = vmul.f32 %v1016, %v1026
      %v1042 = vmul.f32 %v1004, %v1030
      %v1043 = vmul.f32 %v1017, %v1026
      %v1044 = vmul.f32 %v1005, %v1030
      %v1045 = vmul.f32 %v1018, %v1026
      %v1046 = vmul.f32 %v1006, %v1030
      %v1047 = vmul.f32 %v1019, %v1026
      %v1048 = vmul.f32 %v1007, %v1030
      %v1049 = vmul.f32 %v1020, %v1026
      %v1050 = vmul.f32 %v1008, %v1030
      %v1051 = vmul.f32 %v1021, %v1026
      %v1052 = vmul.f32 %v1009, %v1030
      %v1053 = vmul.f32 %v1022, %v1026
      %v1054 = vmul.f32 %v1010, %v1030
      %1055 = vset.pattern.permute.xlu0 2
      %1056 = vperm.xlu0 %1055, %v446
      %v1057 = vpop.permute.xlu0 %1056
      %1059 = vset.pattern.permute.xlu0 2
      %1060 = vperm.xlu0 %1059, %v447
      %v1061 = vpop.permute.xlu0 %1060
      %1063 = vset.pattern.permute.xlu0 2
      %1064 = vperm.xlu0 %1063, %v448
      %v1065 = vpop.permute.xlu0 %1064
      %1067 = vset.pattern.permute.xlu0 2
      %1068 = vperm.xlu0 %1067, %v449
      %v1069 = vpop.permute.xlu0 %1068
      %1071 = vset.pattern.permute.xlu0 2
      %1072 = vperm.xlu0 %1071, %v450
      %v1073 = vpop.permute.xlu0 %1072
      %1075 = vset.pattern.permute.xlu0 2
      %1076 = vperm.xlu0 %1075, %v451
      %v1077 = vpop.permute.xlu0 %1076
      %1079 = vset.pattern.permute.xlu0 2
      %1080 = vperm.xlu0 %1079, %v452
      %v1081 = vpop.permute.xlu0 %1080
      %1083 = vset.pattern.permute.xlu0 2
      %1084 = vperm.xlu0 %1083, %v453
      %v1085 = vpop.permute.xlu0 %1084
      %1087 = vset.pattern.permute.xlu0 2
      %1088 = vperm.xlu0 %1087, %v454
      %v1089 = vpop.permute.xlu0 %1088
      %1091 = vset.pattern.permute.xlu0 2
      %1092 = vperm.xlu0 %1091, %v455
      %v1093 = vpop.permute.xlu0 %1092
      %1095 = vset.pattern.permute.xlu0 2
      %1096 = vperm.xlu0 %1095, %v456
      %v1097 = vpop.permute.xlu0 %1096
      %1099 = vset.pattern.permute.xlu0 2
      %1100 = vperm.xlu0 %1099, %v457
      %v1101 = vpop.permute.xlu0 %1100
      %v1103 = vmul.f32 %v1057, %v1031
      %v1104 = vmul.f32 %v1057, %v1032
      %v1105 = vmul.f32 %v1061, %v1033
      %v1106 = vmul.f32 %v1061, %v1034
      %v1107 = vmul.f32 %v1065, %v1035
      %v1108 = vmul.f32 %v1065, %v1036
      %v1109 = vmul.f32 %v1069, %v1037
      %v1110 = vmul.f32 %v1069, %v1038
      %v1111 = vmul.f32 %v1073, %v1039
      %v1112 = vmul.f32 %v1073, %v1040
      %v1113 = vmul.f32 %v1077, %v1041
      %v1114 = vmul.f32 %v1077, %v1042
      %v1115 = vmul.f32 %v1081, %v1043
      %v1116 = vmul.f32 %v1081, %v1044
      %v1117 = vmul.f32 %v1085, %v1045
      %v1118 = vmul.f32 %v1085, %v1046
      %v1119 = vmul.f32 %v1089, %v1047
      %v1120 = vmul.f32 %v1089, %v1048
      %v1121 = vmul.f32 %v1093, %v1049
      %v1122 = vmul.f32 %v1093, %v1050
      %v1123 = vmul.f32 %v1097, %v1051
      %v1124 = vmul.f32 %v1097, %v1052
      %v1125 = vmul.f32 %v1101, %v1053
      %v1126 = vmul.f32 %v1101, %v1054
      %v1127 = vadd.f32 %v926, %v1103
      %v1128 = vadd.f32 %v927, %v1104
      %v1129 = vadd.f32 %v928, %v1105
      %v1130 = vadd.f32 %v929, %v1106
      %v1131 = vadd.f32 %v930, %v1107
      %v1132 = vadd.f32 %v931, %v1108
      %v1133 = vadd.f32 %v932, %v1109
      %v1134 = vadd.f32 %v933, %v1110
      %v1135 = vadd.f32 %v934, %v1111
      %v1136 = vadd.f32 %v935, %v1112
      %v1137 = vadd.f32 %v936, %v1113
      %v1138 = vadd.f32 %v937, %v1114
      %v1139 = vadd.f32 %v938, %v1115
      %v1140 = vadd.f32 %v939, %v1116
      %v1141 = vadd.f32 %v940, %v1117
      %v1142 = vadd.f32 %v941, %v1118
      %v1143 = vadd.f32 %v942, %v1119
      %v1144 = vadd.f32 %v943, %v1120
      %v1145 = vadd.f32 %v944, %v1121
      %v1146 = vadd.f32 %v945, %v1122
      %v1147 = vadd.f32 %v946, %v1123
      %v1148 = vadd.f32 %v947, %v1124
      %v1149 = vadd.f32 %v948, %v1125
      %v1150 = vadd.f32 %v949, %v1126
      %1151 = vrot.lane.b32.xlu0 %v388, 1
      %v1152 = vpop.permute.xlu0 %1151
      %1153 = vrot.lane.b32.xlu0 %v392, 1
      %v1154 = vpop.permute.xlu0 %1153
      %1155 = vrot.lane.b32.xlu0 %v398, 1
      %v1156 = vpop.permute.xlu0 %1155
      %1157 = vrot.lane.b32.xlu0 %v402, 1
      %v1158 = vpop.permute.xlu0 %1157
      %1159 = vrot.lane.b32.xlu0 %v408, 1
      %v1160 = vpop.permute.xlu0 %1159
      %1161 = vrot.lane.b32.xlu0 %v412, 1
      %v1162 = vpop.permute.xlu0 %1161
      %1163 = vrot.lane.b32.xlu0 %v418, 1
      %v1164 = vpop.permute.xlu0 %1163
      %1165 = vrot.lane.b32.xlu0 %v422, 1
      %v1166 = vpop.permute.xlu0 %1165
      %1167 = vrot.lane.b32.xlu0 %v428, 1
      %v1168 = vpop.permute.xlu0 %1167
      %1169 = vrot.lane.b32.xlu0 %v432, 1
      %v1170 = vpop.permute.xlu0 %1169
      %1171 = vrot.lane.b32.xlu0 %v438, 1
      %v1172 = vpop.permute.xlu0 %1171
      %1173 = vrot.lane.b32.xlu0 %v442, 1
      %v1174 = vpop.permute.xlu0 %1173
      %1175 = vrot.lane.b32.xlu0 %v390, 1
      %v1176 = vpop.permute.xlu0 %1175
      %1177 = vrot.lane.b32.xlu0 %v394, 1
      %v1178 = vpop.permute.xlu0 %1177
      %1179 = vrot.lane.b32.xlu0 %v400, 1
      %v1180 = vpop.permute.xlu0 %1179
      %1181 = vrot.lane.b32.xlu0 %v404, 1
      %v1182 = vpop.permute.xlu0 %1181
      %1183 = vrot.lane.b32.xlu0 %v410, 1
      %v1184 = vpop.permute.xlu0 %1183
      %1185 = vrot.lane.b32.xlu0 %v414, 1
      %v1186 = vpop.permute.xlu0 %1185
      %1187 = vrot.lane.b32.xlu0 %v420, 1
      %v1188 = vpop.permute.xlu0 %1187
      %1189 = vrot.lane.b32.xlu0 %v424, 1
      %v1190 = vpop.permute.xlu0 %1189
      %1191 = vrot.lane.b32.xlu0 %v430, 1
      %v1192 = vpop.permute.xlu0 %1191
      %1193 = vrot.lane.b32.xlu0 %v434, 1
      %v1194 = vpop.permute.xlu0 %1193
      %1195 = vrot.lane.b32.xlu0 %v440, 1
      %v1196 = vpop.permute.xlu0 %1195
      %1197 = vrot.lane.b32.xlu0 %v444, 1
      %v1198 = vpop.permute.xlu0 %1197
      %vm1199 = vcmp.lt.s32.totalorder %v595, 1
      %v1200 = vsel %vm1199, %v1152, %v1176
      %v1201 = vsel %vm1199, %v1154, %v1178
      %v1202 = vsel %vm1199, %v1156, %v1180
      %v1203 = vsel %vm1199, %v1158, %v1182
      %v1204 = vsel %vm1199, %v1160, %v1184
      %v1205 = vsel %vm1199, %v1162, %v1186
      %v1206 = vsel %vm1199, %v1164, %v1188
      %v1207 = vsel %vm1199, %v1166, %v1190
      %v1208 = vsel %vm1199, %v1168, %v1192
      %v1209 = vsel %vm1199, %v1170, %v1194
      %v1210 = vsel %vm1199, %v1172, %v1196
      %v1211 = vsel %vm1199, %v1174, %v1198
      %v1212 = vsel %vm1199, %v1176, %v1152
      %v1213 = vsel %vm1199, %v1178, %v1154
      %v1214 = vsel %vm1199, %v1180, %v1156
      %v1215 = vsel %vm1199, %v1182, %v1158
      %v1216 = vsel %vm1199, %v1184, %v1160
      %v1217 = vsel %vm1199, %v1186, %v1162
      %v1218 = vsel %vm1199, %v1188, %v1164
      %v1219 = vsel %vm1199, %v1190, %v1166
      %v1220 = vsel %vm1199, %v1192, %v1168
      %v1221 = vsel %vm1199, %v1194, %v1170
      %v1222 = vsel %vm1199, %v1196, %v1172
      %v1223 = vsel %vm1199, %v1198, %v1174
      %v1224 = vlaneseq
      %v1225 = vshrl.u32 %v1224, 7
      %v1226 = vsub.s32 3, %v1225
      %v1227 = vrot.slane %v458, %v1226
      %v1228 = vlaneseq
      %v1229 = vshrl.u32 %v1228, 7
      %v1230 = vsub.s32 3, %v1229
      %v1231 = vrot.slane %v459, %v1230
      %v1232 = vmul.f32 %v1212, %v1227
      %v1233 = vmul.f32 %v1200, %v1231
      %v1234 = vmul.f32 %v1213, %v1227
      %v1235 = vmul.f32 %v1201, %v1231
      %v1236 = vmul.f32 %v1214, %v1227
      %v1237 = vmul.f32 %v1202, %v1231
      %v1238 = vmul.f32 %v1215, %v1227
      %v1239 = vmul.f32 %v1203, %v1231
      %v1240 = vmul.f32 %v1216, %v1227
      %v1241 = vmul.f32 %v1204, %v1231
      %v1242 = vmul.f32 %v1217, %v1227
      %v1243 = vmul.f32 %v1205, %v1231
      %v1244 = vmul.f32 %v1218, %v1227
      %v1245 = vmul.f32 %v1206, %v1231
      %v1246 = vmul.f32 %v1219, %v1227
      %v1247 = vmul.f32 %v1207, %v1231
      %v1248 = vmul.f32 %v1220, %v1227
      %v1249 = vmul.f32 %v1208, %v1231
      %v1250 = vmul.f32 %v1221, %v1227
      %v1251 = vmul.f32 %v1209, %v1231
      %v1252 = vmul.f32 %v1222, %v1227
      %v1253 = vmul.f32 %v1210, %v1231
      %v1254 = vmul.f32 %v1223, %v1227
      %v1255 = vmul.f32 %v1211, %v1231
      %1256 = vset.pattern.permute.xlu0 3
      %1257 = vperm.xlu0 %1256, %v446
      %v1258 = vpop.permute.xlu0 %1257
      %1260 = vset.pattern.permute.xlu0 3
      %1261 = vperm.xlu0 %1260, %v447
      %v1262 = vpop.permute.xlu0 %1261
      %1264 = vset.pattern.permute.xlu0 3
      %1265 = vperm.xlu0 %1264, %v448
      %v1266 = vpop.permute.xlu0 %1265
      %1268 = vset.pattern.permute.xlu0 3
      %1269 = vperm.xlu0 %1268, %v449
      %v1270 = vpop.permute.xlu0 %1269
      %1272 = vset.pattern.permute.xlu0 3
      %1273 = vperm.xlu0 %1272, %v450
      %v1274 = vpop.permute.xlu0 %1273
      %1276 = vset.pattern.permute.xlu0 3
      %1277 = vperm.xlu0 %1276, %v451
      %v1278 = vpop.permute.xlu0 %1277
      %1280 = vset.pattern.permute.xlu0 3
      %1281 = vperm.xlu0 %1280, %v452
      %v1282 = vpop.permute.xlu0 %1281
      %1284 = vset.pattern.permute.xlu0 3
      %1285 = vperm.xlu0 %1284, %v453
      %v1286 = vpop.permute.xlu0 %1285
      %1288 = vset.pattern.permute.xlu0 3
      %1289 = vperm.xlu0 %1288, %v454
      %v1290 = vpop.permute.xlu0 %1289
      %1292 = vset.pattern.permute.xlu0 3
      %1293 = vperm.xlu0 %1292, %v455
      %v1294 = vpop.permute.xlu0 %1293
      %1296 = vset.pattern.permute.xlu0 3
      %1297 = vperm.xlu0 %1296, %v456
      %v1298 = vpop.permute.xlu0 %1297
      %1300 = vset.pattern.permute.xlu0 3
      %1301 = vperm.xlu0 %1300, %v457
      %v1302 = vpop.permute.xlu0 %1301
      %v1304 = vmul.f32 %v1258, %v1232
      %v1305 = vmul.f32 %v1258, %v1233
      %v1306 = vmul.f32 %v1262, %v1234
      %v1307 = vmul.f32 %v1262, %v1235
      %v1308 = vmul.f32 %v1266, %v1236
      %v1309 = vmul.f32 %v1266, %v1237
      %v1310 = vmul.f32 %v1270, %v1238
      %v1311 = vmul.f32 %v1270, %v1239
      %v1312 = vmul.f32 %v1274, %v1240
      %v1313 = vmul.f32 %v1274, %v1241
      %v1314 = vmul.f32 %v1278, %v1242
      %v1315 = vmul.f32 %v1278, %v1243
      %v1316 = vmul.f32 %v1282, %v1244
      %v1317 = vmul.f32 %v1282, %v1245
      %v1318 = vmul.f32 %v1286, %v1246
      %v1319 = vmul.f32 %v1286, %v1247
      %v1320 = vmul.f32 %v1290, %v1248
      %v1321 = vmul.f32 %v1290, %v1249
      %v1322 = vmul.f32 %v1294, %v1250
      %v1323 = vmul.f32 %v1294, %v1251
      %v1324 = vmul.f32 %v1298, %v1252
      %v1325 = vmul.f32 %v1298, %v1253
      %v1326 = vmul.f32 %v1302, %v1254
      %v1327 = vmul.f32 %v1302, %v1255
      %v1328 = vadd.f32 %v1127, %v1304
      %v1329 = vadd.f32 %v1128, %v1305
      %v1330 = vadd.f32 %v1129, %v1306
      %v1331 = vadd.f32 %v1130, %v1307
      %v1332 = vadd.f32 %v1131, %v1308
      %v1333 = vadd.f32 %v1132, %v1309
      %v1334 = vadd.f32 %v1133, %v1310
      %v1335 = vadd.f32 %v1134, %v1311
      %v1336 = vadd.f32 %v1135, %v1312
      %v1337 = vadd.f32 %v1136, %v1313
      %v1338 = vadd.f32 %v1137, %v1314
      %v1339 = vadd.f32 %v1138, %v1315
      %v1340 = vadd.f32 %v1139, %v1316
      %v1341 = vadd.f32 %v1140, %v1317
      %v1342 = vadd.f32 %v1141, %v1318
      %v1343 = vadd.f32 %v1142, %v1319
      %v1344 = vadd.f32 %v1143, %v1320
      %v1345 = vadd.f32 %v1144, %v1321
      %v1346 = vadd.f32 %v1145, %v1322
      %v1347 = vadd.f32 %v1146, %v1323
      %v1348 = vadd.f32 %v1147, %v1324
      %v1349 = vadd.f32 %v1148, %v1325
      %v1350 = vadd.f32 %v1149, %v1326
      %v1351 = vadd.f32 %v1150, %v1327
      %1352 = vrot.lane.b32.xlu0 %v388, 127
      %v1353 = vpop.permute.xlu0 %1352
      %1354 = vrot.lane.b32.xlu0 %v392, 127
      %v1355 = vpop.permute.xlu0 %1354
      %1356 = vrot.lane.b32.xlu0 %v398, 127
      %v1357 = vpop.permute.xlu0 %1356
      %1358 = vrot.lane.b32.xlu0 %v402, 127
      %v1359 = vpop.permute.xlu0 %1358
      %1360 = vrot.lane.b32.xlu0 %v408, 127
      %v1361 = vpop.permute.xlu0 %1360
      %1362 = vrot.lane.b32.xlu0 %v412, 127
      %v1363 = vpop.permute.xlu0 %1362
      %1364 = vrot.lane.b32.xlu0 %v418, 127
      %v1365 = vpop.permute.xlu0 %1364
      %1366 = vrot.lane.b32.xlu0 %v422, 127
      %v1367 = vpop.permute.xlu0 %1366
      %1368 = vrot.lane.b32.xlu0 %v428, 127
      %v1369 = vpop.permute.xlu0 %1368
      %1370 = vrot.lane.b32.xlu0 %v432, 127
      %v1371 = vpop.permute.xlu0 %1370
      %1372 = vrot.lane.b32.xlu0 %v438, 127
      %v1373 = vpop.permute.xlu0 %1372
      %1374 = vrot.lane.b32.xlu0 %v442, 127
      %v1375 = vpop.permute.xlu0 %1374
      %1376 = vrot.lane.b32.xlu0 %v390, 127
      %v1377 = vpop.permute.xlu0 %1376
      %1378 = vrot.lane.b32.xlu0 %v394, 127
      %v1379 = vpop.permute.xlu0 %1378
      %1380 = vrot.lane.b32.xlu0 %v400, 127
      %v1381 = vpop.permute.xlu0 %1380
      %1382 = vrot.lane.b32.xlu0 %v404, 127
      %v1383 = vpop.permute.xlu0 %1382
      %1384 = vrot.lane.b32.xlu0 %v410, 127
      %v1385 = vpop.permute.xlu0 %1384
      %1386 = vrot.lane.b32.xlu0 %v414, 127
      %v1387 = vpop.permute.xlu0 %1386
      %1388 = vrot.lane.b32.xlu0 %v420, 127
      %v1389 = vpop.permute.xlu0 %1388
      %1390 = vrot.lane.b32.xlu0 %v424, 127
      %v1391 = vpop.permute.xlu0 %1390
      %1392 = vrot.lane.b32.xlu0 %v430, 127
      %v1393 = vpop.permute.xlu0 %1392
      %1394 = vrot.lane.b32.xlu0 %v434, 127
      %v1395 = vpop.permute.xlu0 %1394
      %1396 = vrot.lane.b32.xlu0 %v440, 127
      %v1397 = vpop.permute.xlu0 %1396
      %1398 = vrot.lane.b32.xlu0 %v444, 127
      %v1399 = vpop.permute.xlu0 %1398
      %vm1400 = vcmp.lt.s32.totalorder %v595, 127
      %v1401 = vsel %vm1400, %v1353, %v1377
      %v1402 = vsel %vm1400, %v1355, %v1379
      %v1403 = vsel %vm1400, %v1357, %v1381
      %v1404 = vsel %vm1400, %v1359, %v1383
      %v1405 = vsel %vm1400, %v1361, %v1385
      %v1406 = vsel %vm1400, %v1363, %v1387
      %v1407 = vsel %vm1400, %v1365, %v1389
      %v1408 = vsel %vm1400, %v1367, %v1391
      %v1409 = vsel %vm1400, %v1369, %v1393
      %v1410 = vsel %vm1400, %v1371, %v1395
      %v1411 = vsel %vm1400, %v1373, %v1397
      %v1412 = vsel %vm1400, %v1375, %v1399
      %v1413 = vsel %vm1400, %v1377, %v1353
      %v1414 = vsel %vm1400, %v1379, %v1355
      %v1415 = vsel %vm1400, %v1381, %v1357
      %v1416 = vsel %vm1400, %v1383, %v1359
      %v1417 = vsel %vm1400, %v1385, %v1361
      %v1418 = vsel %vm1400, %v1387, %v1363
      %v1419 = vsel %vm1400, %v1389, %v1365
      %v1420 = vsel %vm1400, %v1391, %v1367
      %v1421 = vsel %vm1400, %v1393, %v1369
      %v1422 = vsel %vm1400, %v1395, %v1371
      %v1423 = vsel %vm1400, %v1397, %v1373
      %v1424 = vsel %vm1400, %v1399, %v1375
      %v1425 = vlaneseq
      %v1426 = vshrl.u32 %v1425, 7
      %v1427 = vsub.s32 5, %v1426
      %v1428 = vrot.slane %v458, %v1427
      %v1429 = vlaneseq
      %v1430 = vshrl.u32 %v1429, 7
      %v1431 = vsub.s32 5, %v1430
      %v1432 = vrot.slane %v459, %v1431
      %v1433 = vmul.f32 %v1401, %v1428
      %v1434 = vmul.f32 %v1413, %v1432
      %v1435 = vmul.f32 %v1402, %v1428
      %v1436 = vmul.f32 %v1414, %v1432
      %v1437 = vmul.f32 %v1403, %v1428
      %v1438 = vmul.f32 %v1415, %v1432
      %v1439 = vmul.f32 %v1404, %v1428
      %v1440 = vmul.f32 %v1416, %v1432
      %v1441 = vmul.f32 %v1405, %v1428
      %v1442 = vmul.f32 %v1417, %v1432
      %v1443 = vmul.f32 %v1406, %v1428
      %v1444 = vmul.f32 %v1418, %v1432
      %v1445 = vmul.f32 %v1407, %v1428
      %v1446 = vmul.f32 %v1419, %v1432
      %v1447 = vmul.f32 %v1408, %v1428
      %v1448 = vmul.f32 %v1420, %v1432
      %v1449 = vmul.f32 %v1409, %v1428
      %v1450 = vmul.f32 %v1421, %v1432
      %v1451 = vmul.f32 %v1410, %v1428
      %v1452 = vmul.f32 %v1422, %v1432
      %v1453 = vmul.f32 %v1411, %v1428
      %v1454 = vmul.f32 %v1423, %v1432
      %v1455 = vmul.f32 %v1412, %v1428
      %v1456 = vmul.f32 %v1424, %v1432
      %1457 = vset.pattern.permute.xlu0 5
      %1458 = vperm.xlu0 %1457, %v446
      %v1459 = vpop.permute.xlu0 %1458
      %1461 = vset.pattern.permute.xlu0 5
      %1462 = vperm.xlu0 %1461, %v447
      %v1463 = vpop.permute.xlu0 %1462
      %1465 = vset.pattern.permute.xlu0 5
      %1466 = vperm.xlu0 %1465, %v448
      %v1467 = vpop.permute.xlu0 %1466
      %1469 = vset.pattern.permute.xlu0 5
      %1470 = vperm.xlu0 %1469, %v449
      %v1471 = vpop.permute.xlu0 %1470
      %1473 = vset.pattern.permute.xlu0 5
      %1474 = vperm.xlu0 %1473, %v450
      %v1475 = vpop.permute.xlu0 %1474
      %1477 = vset.pattern.permute.xlu0 5
      %1478 = vperm.xlu0 %1477, %v451
      %v1479 = vpop.permute.xlu0 %1478
      %1481 = vset.pattern.permute.xlu0 5
      %1482 = vperm.xlu0 %1481, %v452
      %v1483 = vpop.permute.xlu0 %1482
      %1485 = vset.pattern.permute.xlu0 5
      %1486 = vperm.xlu0 %1485, %v453
      %v1487 = vpop.permute.xlu0 %1486
      %1489 = vset.pattern.permute.xlu0 5
      %1490 = vperm.xlu0 %1489, %v454
      %v1491 = vpop.permute.xlu0 %1490
      %1493 = vset.pattern.permute.xlu0 5
      %1494 = vperm.xlu0 %1493, %v455
      %v1495 = vpop.permute.xlu0 %1494
      %1497 = vset.pattern.permute.xlu0 5
      %1498 = vperm.xlu0 %1497, %v456
      %v1499 = vpop.permute.xlu0 %1498
      %1501 = vset.pattern.permute.xlu0 5
      %1502 = vperm.xlu0 %1501, %v457
      %v1503 = vpop.permute.xlu0 %1502
      %v1505 = vmul.f32 %v1459, %v1433
      %v1506 = vmul.f32 %v1459, %v1434
      %v1507 = vmul.f32 %v1463, %v1435
      %v1508 = vmul.f32 %v1463, %v1436
      %v1509 = vmul.f32 %v1467, %v1437
      %v1510 = vmul.f32 %v1467, %v1438
      %v1511 = vmul.f32 %v1471, %v1439
      %v1512 = vmul.f32 %v1471, %v1440
      %v1513 = vmul.f32 %v1475, %v1441
      %v1514 = vmul.f32 %v1475, %v1442
      %v1515 = vmul.f32 %v1479, %v1443
      %v1516 = vmul.f32 %v1479, %v1444
      %v1517 = vmul.f32 %v1483, %v1445
      %v1518 = vmul.f32 %v1483, %v1446
      %v1519 = vmul.f32 %v1487, %v1447
      %v1520 = vmul.f32 %v1487, %v1448
      %v1521 = vmul.f32 %v1491, %v1449
      %v1522 = vmul.f32 %v1491, %v1450
      %v1523 = vmul.f32 %v1495, %v1451
      %v1524 = vmul.f32 %v1495, %v1452
      %v1525 = vmul.f32 %v1499, %v1453
      %v1526 = vmul.f32 %v1499, %v1454
      %v1527 = vmul.f32 %v1503, %v1455
      %v1528 = vmul.f32 %v1503, %v1456
      %v1529 = vadd.f32 %v1328, %v1505
      %v1530 = vadd.f32 %v1329, %v1506
      %v1531 = vadd.f32 %v1330, %v1507
      %v1532 = vadd.f32 %v1331, %v1508
      %v1533 = vadd.f32 %v1332, %v1509
      %v1534 = vadd.f32 %v1333, %v1510
      %v1535 = vadd.f32 %v1334, %v1511
      %v1536 = vadd.f32 %v1335, %v1512
      %v1537 = vadd.f32 %v1336, %v1513
      %v1538 = vadd.f32 %v1337, %v1514
      %v1539 = vadd.f32 %v1338, %v1515
      %v1540 = vadd.f32 %v1339, %v1516
      %v1541 = vadd.f32 %v1340, %v1517
      %v1542 = vadd.f32 %v1341, %v1518
      %v1543 = vadd.f32 %v1342, %v1519
      %v1544 = vadd.f32 %v1343, %v1520
      %v1545 = vadd.f32 %v1344, %v1521
      %v1546 = vadd.f32 %v1345, %v1522
      %v1547 = vadd.f32 %v1346, %v1523
      %v1548 = vadd.f32 %v1347, %v1524
      %v1549 = vadd.f32 %v1348, %v1525
      %v1550 = vadd.f32 %v1349, %v1526
      %v1551 = vadd.f32 %v1350, %v1527
      %v1552 = vadd.f32 %v1351, %v1528
      %1553 = vrot.lane.b32.xlu0 %v388, 113
      %v1554 = vpop.permute.xlu0 %1553
      %1555 = vrot.lane.b32.xlu0 %v392, 113
      %v1556 = vpop.permute.xlu0 %1555
      %1557 = vrot.lane.b32.xlu0 %v398, 113
      %v1558 = vpop.permute.xlu0 %1557
      %1559 = vrot.lane.b32.xlu0 %v402, 113
      %v1560 = vpop.permute.xlu0 %1559
      %1561 = vrot.lane.b32.xlu0 %v408, 113
      %v1562 = vpop.permute.xlu0 %1561
      %1563 = vrot.lane.b32.xlu0 %v412, 113
      %v1564 = vpop.permute.xlu0 %1563
      %1565 = vrot.lane.b32.xlu0 %v418, 113
      %v1566 = vpop.permute.xlu0 %1565
      %1567 = vrot.lane.b32.xlu0 %v422, 113
      %v1568 = vpop.permute.xlu0 %1567
      %1569 = vrot.lane.b32.xlu0 %v428, 113
      %v1570 = vpop.permute.xlu0 %1569
      %1571 = vrot.lane.b32.xlu0 %v432, 113
      %v1572 = vpop.permute.xlu0 %1571
      %1573 = vrot.lane.b32.xlu0 %v438, 113
      %v1574 = vpop.permute.xlu0 %1573
      %1575 = vrot.lane.b32.xlu0 %v442, 113
      %v1576 = vpop.permute.xlu0 %1575
      %1577 = vrot.lane.b32.xlu0 %v390, 113
      %v1578 = vpop.permute.xlu0 %1577
      %1579 = vrot.lane.b32.xlu0 %v394, 113
      %v1580 = vpop.permute.xlu0 %1579
      %1581 = vrot.lane.b32.xlu0 %v400, 113
      %v1582 = vpop.permute.xlu0 %1581
      %1583 = vrot.lane.b32.xlu0 %v404, 113
      %v1584 = vpop.permute.xlu0 %1583
      %1585 = vrot.lane.b32.xlu0 %v410, 113
      %v1586 = vpop.permute.xlu0 %1585
      %1587 = vrot.lane.b32.xlu0 %v414, 113
      %v1588 = vpop.permute.xlu0 %1587
      %1589 = vrot.lane.b32.xlu0 %v420, 113
      %v1590 = vpop.permute.xlu0 %1589
      %1591 = vrot.lane.b32.xlu0 %v424, 113
      %v1592 = vpop.permute.xlu0 %1591
      %1593 = vrot.lane.b32.xlu0 %v430, 113
      %v1594 = vpop.permute.xlu0 %1593
      %1595 = vrot.lane.b32.xlu0 %v434, 113
      %v1596 = vpop.permute.xlu0 %1595
      %1597 = vrot.lane.b32.xlu0 %v440, 113
      %v1598 = vpop.permute.xlu0 %1597
      %1599 = vrot.lane.b32.xlu0 %v444, 113
      %v1600 = vpop.permute.xlu0 %1599
      %vm1601 = vcmp.lt.s32.totalorder %v595, 113
      %v1602 = vsel %vm1601, %v1554, %v1578
      %v1603 = vsel %vm1601, %v1556, %v1580
      %v1604 = vsel %vm1601, %v1558, %v1582
      %v1605 = vsel %vm1601, %v1560, %v1584
      %v1606 = vsel %vm1601, %v1562, %v1586
      %v1607 = vsel %vm1601, %v1564, %v1588
      %v1608 = vsel %vm1601, %v1566, %v1590
      %v1609 = vsel %vm1601, %v1568, %v1592
      %v1610 = vsel %vm1601, %v1570, %v1594
      %v1611 = vsel %vm1601, %v1572, %v1596
      %v1612 = vsel %vm1601, %v1574, %v1598
      %v1613 = vsel %vm1601, %v1576, %v1600
      %v1614 = vsel %vm1601, %v1578, %v1554
      %v1615 = vsel %vm1601, %v1580, %v1556
      %v1616 = vsel %vm1601, %v1582, %v1558
      %v1617 = vsel %vm1601, %v1584, %v1560
      %v1618 = vsel %vm1601, %v1586, %v1562
      %v1619 = vsel %vm1601, %v1588, %v1564
      %v1620 = vsel %vm1601, %v1590, %v1566
      %v1621 = vsel %vm1601, %v1592, %v1568
      %v1622 = vsel %vm1601, %v1594, %v1570
      %v1623 = vsel %vm1601, %v1596, %v1572
      %v1624 = vsel %vm1601, %v1598, %v1574
      %v1625 = vsel %vm1601, %v1600, %v1576
      %v1626 = vlaneseq
      %v1627 = vshrl.u32 %v1626, 7
      %v1628 = vsub.s32 6, %v1627
      %v1629 = vrot.slane %v458, %v1628
      %v1630 = vlaneseq
      %v1631 = vshrl.u32 %v1630, 7
      %v1632 = vsub.s32 6, %v1631
      %v1633 = vrot.slane %v459, %v1632
      %v1634 = vmul.f32 %v1602, %v1629
      %v1635 = vmul.f32 %v1614, %v1633
      %v1636 = vmul.f32 %v1603, %v1629
      %v1637 = vmul.f32 %v1615, %v1633
      %v1638 = vmul.f32 %v1604, %v1629
      %v1639 = vmul.f32 %v1616, %v1633
      %v1640 = vmul.f32 %v1605, %v1629
      %v1641 = vmul.f32 %v1617, %v1633
      %v1642 = vmul.f32 %v1606, %v1629
      %v1643 = vmul.f32 %v1618, %v1633
      %v1644 = vmul.f32 %v1607, %v1629
      %v1645 = vmul.f32 %v1619, %v1633
      %v1646 = vmul.f32 %v1608, %v1629
      %v1647 = vmul.f32 %v1620, %v1633
      %v1648 = vmul.f32 %v1609, %v1629
      %v1649 = vmul.f32 %v1621, %v1633
      %v1650 = vmul.f32 %v1610, %v1629
      %v1651 = vmul.f32 %v1622, %v1633
      %v1652 = vmul.f32 %v1611, %v1629
      %v1653 = vmul.f32 %v1623, %v1633
      %v1654 = vmul.f32 %v1612, %v1629
      %v1655 = vmul.f32 %v1624, %v1633
      %v1656 = vmul.f32 %v1613, %v1629
      %v1657 = vmul.f32 %v1625, %v1633
      %1658 = vset.pattern.permute.xlu0 6
      %1659 = vperm.xlu0 %1658, %v446
      %v1660 = vpop.permute.xlu0 %1659
      %1662 = vset.pattern.permute.xlu0 6
      %1663 = vperm.xlu0 %1662, %v447
      %v1664 = vpop.permute.xlu0 %1663
      %1666 = vset.pattern.permute.xlu0 6
      %1667 = vperm.xlu0 %1666, %v448
      %v1668 = vpop.permute.xlu0 %1667
      %1670 = vset.pattern.permute.xlu0 6
      %1671 = vperm.xlu0 %1670, %v449
      %v1672 = vpop.permute.xlu0 %1671
      %1674 = vset.pattern.permute.xlu0 6
      %1675 = vperm.xlu0 %1674, %v450
      %v1676 = vpop.permute.xlu0 %1675
      %1678 = vset.pattern.permute.xlu0 6
      %1679 = vperm.xlu0 %1678, %v451
      %v1680 = vpop.permute.xlu0 %1679
      %1682 = vset.pattern.permute.xlu0 6
      %1683 = vperm.xlu0 %1682, %v452
      %v1684 = vpop.permute.xlu0 %1683
      %1686 = vset.pattern.permute.xlu0 6
      %1687 = vperm.xlu0 %1686, %v453
      %v1688 = vpop.permute.xlu0 %1687
      %1690 = vset.pattern.permute.xlu0 6
      %1691 = vperm.xlu0 %1690, %v454
      %v1692 = vpop.permute.xlu0 %1691
      %1694 = vset.pattern.permute.xlu0 6
      %1695 = vperm.xlu0 %1694, %v455
      %v1696 = vpop.permute.xlu0 %1695
      %1698 = vset.pattern.permute.xlu0 6
      %1699 = vperm.xlu0 %1698, %v456
      %v1700 = vpop.permute.xlu0 %1699
      %1702 = vset.pattern.permute.xlu0 6
      %1703 = vperm.xlu0 %1702, %v457
      %v1704 = vpop.permute.xlu0 %1703
      %v1706 = vmul.f32 %v1660, %v1634
      %v1707 = vmul.f32 %v1660, %v1635
      %v1708 = vmul.f32 %v1664, %v1636
      %v1709 = vmul.f32 %v1664, %v1637
      %v1710 = vmul.f32 %v1668, %v1638
      %v1711 = vmul.f32 %v1668, %v1639
      %v1712 = vmul.f32 %v1672, %v1640
      %v1713 = vmul.f32 %v1672, %v1641
      %v1714 = vmul.f32 %v1676, %v1642
      %v1715 = vmul.f32 %v1676, %v1643
      %v1716 = vmul.f32 %v1680, %v1644
      %v1717 = vmul.f32 %v1680, %v1645
      %v1718 = vmul.f32 %v1684, %v1646
      %v1719 = vmul.f32 %v1684, %v1647
      %v1720 = vmul.f32 %v1688, %v1648
      %v1721 = vmul.f32 %v1688, %v1649
      %v1722 = vmul.f32 %v1692, %v1650
      %v1723 = vmul.f32 %v1692, %v1651
      %v1724 = vmul.f32 %v1696, %v1652
      %v1725 = vmul.f32 %v1696, %v1653
      %v1726 = vmul.f32 %v1700, %v1654
      %v1727 = vmul.f32 %v1700, %v1655
      %v1728 = vmul.f32 %v1704, %v1656
      %v1729 = vmul.f32 %v1704, %v1657
      %v1730 = vadd.f32 %v1529, %v1706
      %v1731 = vadd.f32 %v1530, %v1707
      %v1732 = vadd.f32 %v1531, %v1708
      %v1733 = vadd.f32 %v1532, %v1709
      %v1734 = vadd.f32 %v1533, %v1710
      %v1735 = vadd.f32 %v1534, %v1711
      %v1736 = vadd.f32 %v1535, %v1712
      %v1737 = vadd.f32 %v1536, %v1713
      %v1738 = vadd.f32 %v1537, %v1714
      %v1739 = vadd.f32 %v1538, %v1715
      %v1740 = vadd.f32 %v1539, %v1716
      %v1741 = vadd.f32 %v1540, %v1717
      %v1742 = vadd.f32 %v1541, %v1718
      %v1743 = vadd.f32 %v1542, %v1719
      %v1744 = vadd.f32 %v1543, %v1720
      %v1745 = vadd.f32 %v1544, %v1721
      %v1746 = vadd.f32 %v1545, %v1722
      %v1747 = vadd.f32 %v1546, %v1723
      %v1748 = vadd.f32 %v1547, %v1724
      %v1749 = vadd.f32 %v1548, %v1725
      %v1750 = vadd.f32 %v1549, %v1726
      %v1751 = vadd.f32 %v1550, %v1727
      %v1752 = vadd.f32 %v1551, %v1728
      %v1753 = vadd.f32 %v1552, %v1729
      %1754 = vrot.lane.b32.xlu0 %v388, 112
      %v1755 = vpop.permute.xlu0 %1754
      %1756 = vrot.lane.b32.xlu0 %v392, 112
      %v1757 = vpop.permute.xlu0 %1756
      %1758 = vrot.lane.b32.xlu0 %v398, 112
      %v1759 = vpop.permute.xlu0 %1758
      %1760 = vrot.lane.b32.xlu0 %v402, 112
      %v1761 = vpop.permute.xlu0 %1760
      %1762 = vrot.lane.b32.xlu0 %v408, 112
      %v1763 = vpop.permute.xlu0 %1762
      %1764 = vrot.lane.b32.xlu0 %v412, 112
      %v1765 = vpop.permute.xlu0 %1764
      %1766 = vrot.lane.b32.xlu0 %v418, 112
      %v1767 = vpop.permute.xlu0 %1766
      %1768 = vrot.lane.b32.xlu0 %v422, 112
      %v1769 = vpop.permute.xlu0 %1768
      %1770 = vrot.lane.b32.xlu0 %v428, 112
      %v1771 = vpop.permute.xlu0 %1770
      %1772 = vrot.lane.b32.xlu0 %v432, 112
      %v1773 = vpop.permute.xlu0 %1772
      %1774 = vrot.lane.b32.xlu0 %v438, 112
      %v1775 = vpop.permute.xlu0 %1774
      %1776 = vrot.lane.b32.xlu0 %v442, 112
      %v1777 = vpop.permute.xlu0 %1776
      %1778 = vrot.lane.b32.xlu0 %v390, 112
      %v1779 = vpop.permute.xlu0 %1778
      %1780 = vrot.lane.b32.xlu0 %v394, 112
      %v1781 = vpop.permute.xlu0 %1780
      %1782 = vrot.lane.b32.xlu0 %v400, 112
      %v1783 = vpop.permute.xlu0 %1782
      %1784 = vrot.lane.b32.xlu0 %v404, 112
      %v1785 = vpop.permute.xlu0 %1784
      %1786 = vrot.lane.b32.xlu0 %v410, 112
      %v1787 = vpop.permute.xlu0 %1786
      %1788 = vrot.lane.b32.xlu0 %v414, 112
      %v1789 = vpop.permute.xlu0 %1788
      %1790 = vrot.lane.b32.xlu0 %v420, 112
      %v1791 = vpop.permute.xlu0 %1790
      %1792 = vrot.lane.b32.xlu0 %v424, 112
      %v1793 = vpop.permute.xlu0 %1792
      %1794 = vrot.lane.b32.xlu0 %v430, 112
      %v1795 = vpop.permute.xlu0 %1794
      %1796 = vrot.lane.b32.xlu0 %v434, 112
      %v1797 = vpop.permute.xlu0 %1796
      %1798 = vrot.lane.b32.xlu0 %v440, 112
      %v1799 = vpop.permute.xlu0 %1798
      %1800 = vrot.lane.b32.xlu0 %v444, 112
      %v1801 = vpop.permute.xlu0 %1800
      %vm1802 = vcmp.lt.s32.totalorder %v595, 112
      %v1803 = vsel %vm1802, %v1755, %v1779
      %v1804 = vsel %vm1802, %v1757, %v1781
      %v1805 = vsel %vm1802, %v1759, %v1783
      %v1806 = vsel %vm1802, %v1761, %v1785
      %v1807 = vsel %vm1802, %v1763, %v1787
      %v1808 = vsel %vm1802, %v1765, %v1789
      %v1809 = vsel %vm1802, %v1767, %v1791
      %v1810 = vsel %vm1802, %v1769, %v1793
      %v1811 = vsel %vm1802, %v1771, %v1795
      %v1812 = vsel %vm1802, %v1773, %v1797
      %v1813 = vsel %vm1802, %v1775, %v1799
      %v1814 = vsel %vm1802, %v1777, %v1801
      %v1815 = vsel %vm1802, %v1779, %v1755
      %v1816 = vsel %vm1802, %v1781, %v1757
      %v1817 = vsel %vm1802, %v1783, %v1759
      %v1818 = vsel %vm1802, %v1785, %v1761
      %v1819 = vsel %vm1802, %v1787, %v1763
      %v1820 = vsel %vm1802, %v1789, %v1765
      %v1821 = vsel %vm1802, %v1791, %v1767
      %v1822 = vsel %vm1802, %v1793, %v1769
      %v1823 = vsel %vm1802, %v1795, %v1771
      %v1824 = vsel %vm1802, %v1797, %v1773
      %v1825 = vsel %vm1802, %v1799, %v1775
      %v1826 = vsel %vm1802, %v1801, %v1777
      %v1827 = vlaneseq
      %v1828 = vshrl.u32 %v1827, 7
      %v1829 = vsub.s32 7, %v1828
      %v1830 = vrot.slane %v458, %v1829
      %v1831 = vlaneseq
      %v1832 = vshrl.u32 %v1831, 7
      %v1833 = vsub.s32 7, %v1832
      %v1834 = vrot.slane %v459, %v1833
      %v1835 = vmul.f32 %v1803, %v1830
      %v1836 = vmul.f32 %v1815, %v1834
      %v1837 = vmul.f32 %v1804, %v1830
      %v1838 = vmul.f32 %v1816, %v1834
      %v1839 = vmul.f32 %v1805, %v1830
      %v1840 = vmul.f32 %v1817, %v1834
      %v1841 = vmul.f32 %v1806, %v1830
      %v1842 = vmul.f32 %v1818, %v1834
      %v1843 = vmul.f32 %v1807, %v1830
      %v1844 = vmul.f32 %v1819, %v1834
      %v1845 = vmul.f32 %v1808, %v1830
      %v1846 = vmul.f32 %v1820, %v1834
      %v1847 = vmul.f32 %v1809, %v1830
      %v1848 = vmul.f32 %v1821, %v1834
      %v1849 = vmul.f32 %v1810, %v1830
      %v1850 = vmul.f32 %v1822, %v1834
      %v1851 = vmul.f32 %v1811, %v1830
      %v1852 = vmul.f32 %v1823, %v1834
      %v1853 = vmul.f32 %v1812, %v1830
      %v1854 = vmul.f32 %v1824, %v1834
      %v1855 = vmul.f32 %v1813, %v1830
      %v1856 = vmul.f32 %v1825, %v1834
      %v1857 = vmul.f32 %v1814, %v1830
      %v1858 = vmul.f32 %v1826, %v1834
      %1859 = vset.pattern.permute.xlu0 7
      %1860 = vperm.xlu0 %1859, %v446
      %v1861 = vpop.permute.xlu0 %1860
      %1863 = vset.pattern.permute.xlu0 7
      %1864 = vperm.xlu0 %1863, %v447
      %v1865 = vpop.permute.xlu0 %1864
      %1867 = vset.pattern.permute.xlu0 7
      %1868 = vperm.xlu0 %1867, %v448
      %v1869 = vpop.permute.xlu0 %1868
      %1871 = vset.pattern.permute.xlu0 7
      %1872 = vperm.xlu0 %1871, %v449
      %v1873 = vpop.permute.xlu0 %1872
      %1875 = vset.pattern.permute.xlu0 7
      %1876 = vperm.xlu0 %1875, %v450
      %v1877 = vpop.permute.xlu0 %1876
      %1879 = vset.pattern.permute.xlu0 7
      %1880 = vperm.xlu0 %1879, %v451
      %v1881 = vpop.permute.xlu0 %1880
      %1883 = vset.pattern.permute.xlu0 7
      %1884 = vperm.xlu0 %1883, %v452
      %v1885 = vpop.permute.xlu0 %1884
      %1887 = vset.pattern.permute.xlu0 7
      %1888 = vperm.xlu0 %1887, %v453
      %v1889 = vpop.permute.xlu0 %1888
      %1891 = vset.pattern.permute.xlu0 7
      %1892 = vperm.xlu0 %1891, %v454
      %v1893 = vpop.permute.xlu0 %1892
      %1895 = vset.pattern.permute.xlu0 7
      %1896 = vperm.xlu0 %1895, %v455
      %v1897 = vpop.permute.xlu0 %1896
      %1899 = vset.pattern.permute.xlu0 7
      %1900 = vperm.xlu0 %1899, %v456
      %v1901 = vpop.permute.xlu0 %1900
      %1903 = vset.pattern.permute.xlu0 7
      %1904 = vperm.xlu0 %1903, %v457
      %v1905 = vpop.permute.xlu0 %1904
      %v1907 = vmul.f32 %v1861, %v1835
      %v1908 = vmul.f32 %v1861, %v1836
      %v1909 = vmul.f32 %v1865, %v1837
      %v1910 = vmul.f32 %v1865, %v1838
      %v1911 = vmul.f32 %v1869, %v1839
      %v1912 = vmul.f32 %v1869, %v1840
      %v1913 = vmul.f32 %v1873, %v1841
      %v1914 = vmul.f32 %v1873, %v1842
      %v1915 = vmul.f32 %v1877, %v1843
      %v1916 = vmul.f32 %v1877, %v1844
      %v1917 = vmul.f32 %v1881, %v1845
      %v1918 = vmul.f32 %v1881, %v1846
      %v1919 = vmul.f32 %v1885, %v1847
      %v1920 = vmul.f32 %v1885, %v1848
      %v1921 = vmul.f32 %v1889, %v1849
      %v1922 = vmul.f32 %v1889, %v1850
      %v1923 = vmul.f32 %v1893, %v1851
      %v1924 = vmul.f32 %v1893, %v1852
      %v1925 = vmul.f32 %v1897, %v1853
      %v1926 = vmul.f32 %v1897, %v1854
      %v1927 = vmul.f32 %v1901, %v1855
      %v1928 = vmul.f32 %v1901, %v1856
      %v1929 = vmul.f32 %v1905, %v1857
      %v1930 = vmul.f32 %v1905, %v1858
      %v1931 = vadd.f32 %v1730, %v1907
      %v1932 = vadd.f32 %v1731, %v1908
      %v1933 = vadd.f32 %v1732, %v1909
      %v1934 = vadd.f32 %v1733, %v1910
      %v1935 = vadd.f32 %v1734, %v1911
      %v1936 = vadd.f32 %v1735, %v1912
      %v1937 = vadd.f32 %v1736, %v1913
      %v1938 = vadd.f32 %v1737, %v1914
      %v1939 = vadd.f32 %v1738, %v1915
      %v1940 = vadd.f32 %v1739, %v1916
      %v1941 = vadd.f32 %v1740, %v1917
      %v1942 = vadd.f32 %v1741, %v1918
      %v1943 = vadd.f32 %v1742, %v1919
      %v1944 = vadd.f32 %v1743, %v1920
      %v1945 = vadd.f32 %v1744, %v1921
      %v1946 = vadd.f32 %v1745, %v1922
      %v1947 = vadd.f32 %v1746, %v1923
      %v1948 = vadd.f32 %v1747, %v1924
      %v1949 = vadd.f32 %v1748, %v1925
      %v1950 = vadd.f32 %v1749, %v1926
      %v1951 = vadd.f32 %v1750, %v1927
      %v1952 = vadd.f32 %v1751, %v1928
      %v1953 = vadd.f32 %v1752, %v1929
      %v1954 = vadd.f32 %v1753, %v1930
      %1955 = vrot.lane.b32.xlu0 %v388, 111
      %v1956 = vpop.permute.xlu0 %1955
      %1957 = vrot.lane.b32.xlu0 %v392, 111
      %v1958 = vpop.permute.xlu0 %1957
      %1959 = vrot.lane.b32.xlu0 %v398, 111
      %v1960 = vpop.permute.xlu0 %1959
      %1961 = vrot.lane.b32.xlu0 %v402, 111
      %v1962 = vpop.permute.xlu0 %1961
      %1963 = vrot.lane.b32.xlu0 %v408, 111
      %v1964 = vpop.permute.xlu0 %1963
      %1965 = vrot.lane.b32.xlu0 %v412, 111
      %v1966 = vpop.permute.xlu0 %1965
      %1967 = vrot.lane.b32.xlu0 %v418, 111
      %v1968 = vpop.permute.xlu0 %1967
      %1969 = vrot.lane.b32.xlu0 %v422, 111
      %v1970 = vpop.permute.xlu0 %1969
      %1971 = vrot.lane.b32.xlu0 %v428, 111
      %v1972 = vpop.permute.xlu0 %1971
      %1973 = vrot.lane.b32.xlu0 %v432, 111
      %v1974 = vpop.permute.xlu0 %1973
      %1975 = vrot.lane.b32.xlu0 %v438, 111
      %v1976 = vpop.permute.xlu0 %1975
      %1977 = vrot.lane.b32.xlu0 %v442, 111
      %v1978 = vpop.permute.xlu0 %1977
      %1979 = vrot.lane.b32.xlu0 %v390, 111
      %v1980 = vpop.permute.xlu0 %1979
      %1981 = vrot.lane.b32.xlu0 %v394, 111
      %v1982 = vpop.permute.xlu0 %1981
      %1983 = vrot.lane.b32.xlu0 %v400, 111
      %v1984 = vpop.permute.xlu0 %1983
      %1985 = vrot.lane.b32.xlu0 %v404, 111
      %v1986 = vpop.permute.xlu0 %1985
      %1987 = vrot.lane.b32.xlu0 %v410, 111
      %v1988 = vpop.permute.xlu0 %1987
      %1989 = vrot.lane.b32.xlu0 %v414, 111
      %v1990 = vpop.permute.xlu0 %1989
      %1991 = vrot.lane.b32.xlu0 %v420, 111
      %v1992 = vpop.permute.xlu0 %1991
      %1993 = vrot.lane.b32.xlu0 %v424, 111
      %v1994 = vpop.permute.xlu0 %1993
      %1995 = vrot.lane.b32.xlu0 %v430, 111
      %v1996 = vpop.permute.xlu0 %1995
      %1997 = vrot.lane.b32.xlu0 %v434, 111
      %v1998 = vpop.permute.xlu0 %1997
      %1999 = vrot.lane.b32.xlu0 %v440, 111
      %v2000 = vpop.permute.xlu0 %1999
      %2001 = vrot.lane.b32.xlu0 %v444, 111
      %v2002 = vpop.permute.xlu0 %2001
      %vm2003 = vcmp.lt.s32.totalorder %v595, 111
      %v2004 = vsel %vm2003, %v1956, %v1980
      %v2005 = vsel %vm2003, %v1958, %v1982
      %v2006 = vsel %vm2003, %v1960, %v1984
      %v2007 = vsel %vm2003, %v1962, %v1986
      %v2008 = vsel %vm2003, %v1964, %v1988
      %v2009 = vsel %vm2003, %v1966, %v1990
      %v2010 = vsel %vm2003, %v1968, %v1992
      %v2011 = vsel %vm2003, %v1970, %v1994
      %v2012 = vsel %vm2003, %v1972, %v1996
      %v2013 = vsel %vm2003, %v1974, %v1998
      %v2014 = vsel %vm2003, %v1976, %v2000
      %v2015 = vsel %vm2003, %v1978, %v2002
      %v2016 = vsel %vm2003, %v1980, %v1956
      %v2017 = vsel %vm2003, %v1982, %v1958
      %v2018 = vsel %vm2003, %v1984, %v1960
      %v2019 = vsel %vm2003, %v1986, %v1962
      %v2020 = vsel %vm2003, %v1988, %v1964
      %v2021 = vsel %vm2003, %v1990, %v1966
      %v2022 = vsel %vm2003, %v1992, %v1968
      %v2023 = vsel %vm2003, %v1994, %v1970
      %v2024 = vsel %vm2003, %v1996, %v1972
      %v2025 = vsel %vm2003, %v1998, %v1974
      %v2026 = vsel %vm2003, %v2000, %v1976
      %v2027 = vsel %vm2003, %v2002, %v1978
      %v2028 = vlaneseq
      %v2029 = vshrl.u32 %v2028, 7
      %v2030 = vsub.s32 0, %v2029
      %v2031 = vrot.slane %v460, %v2030
      %v2032 = vlaneseq
      %v2033 = vshrl.u32 %v2032, 7
      %v2034 = vsub.s32 0, %v2033
      %v2035 = vrot.slane %v461, %v2034
      %v2036 = vmul.f32 %v2004, %v2031
      %v2037 = vmul.f32 %v2016, %v2035
      %v2038 = vmul.f32 %v2005, %v2031
      %v2039 = vmul.f32 %v2017, %v2035
      %v2040 = vmul.f32 %v2006, %v2031
      %v2041 = vmul.f32 %v2018, %v2035
      %v2042 = vmul.f32 %v2007, %v2031
      %v2043 = vmul.f32 %v2019, %v2035
      %v2044 = vmul.f32 %v2008, %v2031
      %v2045 = vmul.f32 %v2020, %v2035
      %v2046 = vmul.f32 %v2009, %v2031
      %v2047 = vmul.f32 %v2021, %v2035
      %v2048 = vmul.f32 %v2010, %v2031
      %v2049 = vmul.f32 %v2022, %v2035
      %v2050 = vmul.f32 %v2011, %v2031
      %v2051 = vmul.f32 %v2023, %v2035
      %v2052 = vmul.f32 %v2012, %v2031
      %v2053 = vmul.f32 %v2024, %v2035
      %v2054 = vmul.f32 %v2013, %v2031
      %v2055 = vmul.f32 %v2025, %v2035
      %v2056 = vmul.f32 %v2014, %v2031
      %v2057 = vmul.f32 %v2026, %v2035
      %v2058 = vmul.f32 %v2015, %v2031
      %v2059 = vmul.f32 %v2027, %v2035
      %2060 = vset.pattern.permute.xlu0 8
      %2061 = vperm.xlu0 %2060, %v446
      %v2062 = vpop.permute.xlu0 %2061
      %2064 = vset.pattern.permute.xlu0 8
      %2065 = vperm.xlu0 %2064, %v447
      %v2066 = vpop.permute.xlu0 %2065
      %2068 = vset.pattern.permute.xlu0 8
      %2069 = vperm.xlu0 %2068, %v448
      %v2070 = vpop.permute.xlu0 %2069
      %2072 = vset.pattern.permute.xlu0 8
      %2073 = vperm.xlu0 %2072, %v449
      %v2074 = vpop.permute.xlu0 %2073
      %2076 = vset.pattern.permute.xlu0 8
      %2077 = vperm.xlu0 %2076, %v450
      %v2078 = vpop.permute.xlu0 %2077
      %2080 = vset.pattern.permute.xlu0 8
      %2081 = vperm.xlu0 %2080, %v451
      %v2082 = vpop.permute.xlu0 %2081
      %2084 = vset.pattern.permute.xlu0 8
      %2085 = vperm.xlu0 %2084, %v452
      %v2086 = vpop.permute.xlu0 %2085
      %2088 = vset.pattern.permute.xlu0 8
      %2089 = vperm.xlu0 %2088, %v453
      %v2090 = vpop.permute.xlu0 %2089
      %2092 = vset.pattern.permute.xlu0 8
      %2093 = vperm.xlu0 %2092, %v454
      %v2094 = vpop.permute.xlu0 %2093
      %2096 = vset.pattern.permute.xlu0 8
      %2097 = vperm.xlu0 %2096, %v455
      %v2098 = vpop.permute.xlu0 %2097
      %2100 = vset.pattern.permute.xlu0 8
      %2101 = vperm.xlu0 %2100, %v456
      %v2102 = vpop.permute.xlu0 %2101
      %2104 = vset.pattern.permute.xlu0 8
      %2105 = vperm.xlu0 %2104, %v457
      %v2106 = vpop.permute.xlu0 %2105
      %v2108 = vmul.f32 %v2062, %v2036
      %v2109 = vmul.f32 %v2062, %v2037
      %v2110 = vmul.f32 %v2066, %v2038
      %v2111 = vmul.f32 %v2066, %v2039
      %v2112 = vmul.f32 %v2070, %v2040
      %v2113 = vmul.f32 %v2070, %v2041
      %v2114 = vmul.f32 %v2074, %v2042
      %v2115 = vmul.f32 %v2074, %v2043
      %v2116 = vmul.f32 %v2078, %v2044
      %v2117 = vmul.f32 %v2078, %v2045
      %v2118 = vmul.f32 %v2082, %v2046
      %v2119 = vmul.f32 %v2082, %v2047
      %v2120 = vmul.f32 %v2086, %v2048
      %v2121 = vmul.f32 %v2086, %v2049
      %v2122 = vmul.f32 %v2090, %v2050
      %v2123 = vmul.f32 %v2090, %v2051
      %v2124 = vmul.f32 %v2094, %v2052
      %v2125 = vmul.f32 %v2094, %v2053
      %v2126 = vmul.f32 %v2098, %v2054
      %v2127 = vmul.f32 %v2098, %v2055
      %v2128 = vmul.f32 %v2102, %v2056
      %v2129 = vmul.f32 %v2102, %v2057
      %v2130 = vmul.f32 %v2106, %v2058
      %v2131 = vmul.f32 %v2106, %v2059
      %v2132 = vadd.f32 %v1931, %v2108
      %v2133 = vadd.f32 %v1932, %v2109
      %v2134 = vadd.f32 %v1933, %v2110
      %v2135 = vadd.f32 %v1934, %v2111
      %v2136 = vadd.f32 %v1935, %v2112
      %v2137 = vadd.f32 %v1936, %v2113
      %v2138 = vadd.f32 %v1937, %v2114
      %v2139 = vadd.f32 %v1938, %v2115
      %v2140 = vadd.f32 %v1939, %v2116
      %v2141 = vadd.f32 %v1940, %v2117
      %v2142 = vadd.f32 %v1941, %v2118
      %v2143 = vadd.f32 %v1942, %v2119
      %v2144 = vadd.f32 %v1943, %v2120
      %v2145 = vadd.f32 %v1944, %v2121
      %v2146 = vadd.f32 %v1945, %v2122
      %v2147 = vadd.f32 %v1946, %v2123
      %v2148 = vadd.f32 %v1947, %v2124
      %v2149 = vadd.f32 %v1948, %v2125
      %v2150 = vadd.f32 %v1949, %v2126
      %v2151 = vadd.f32 %v1950, %v2127
      %v2152 = vadd.f32 %v1951, %v2128
      %v2153 = vadd.f32 %v1952, %v2129
      %v2154 = vadd.f32 %v1953, %v2130
      %v2155 = vadd.f32 %v1954, %v2131
      %v2156 = vpack.c.bf16 %v2134, %v2132
      %v2157 = vpack.c.bf16 %v2135, %v2133
      %v2158 = vpack.c.bf16 %v2138, %v2136
      %v2159 = vpack.c.bf16 %v2139, %v2137
      %v2160 = vpack.c.bf16 %v2142, %v2140
      %v2161 = vpack.c.bf16 %v2143, %v2141
      %v2162 = vpack.c.bf16 %v2146, %v2144
      %v2163 = vpack.c.bf16 %v2147, %v2145
      %v2164 = vpack.c.bf16 %v2150, %v2148
      %v2165 = vpack.c.bf16 %v2151, %v2149
      %v2166 = vpack.c.bf16 %v2154, %v2152
      %v2167 = vpack.c.bf16 %v2155, %v2153
      %v2180 = vunpack.c.l.b16 %v2156
      %v2181 = vunpack.c.l.b16 %v2157
      %v2182 = vunpack.c.h.b16 %v2156
      %v2183 = vunpack.c.h.b16 %v2157
      %v2184 = vunpack.c.l.b16 %v2158
      %v2185 = vunpack.c.l.b16 %v2159
      %v2186 = vunpack.c.h.b16 %v2158
      %v2187 = vunpack.c.h.b16 %v2159
      %v2188 = vunpack.c.l.b16 %v2160
      %v2189 = vunpack.c.l.b16 %v2161
      %v2190 = vunpack.c.h.b16 %v2160
      %v2191 = vunpack.c.h.b16 %v2161
      %v2192 = vunpack.c.l.b16 %v2162
      %v2193 = vunpack.c.l.b16 %v2163
      %v2194 = vunpack.c.h.b16 %v2162
      %v2195 = vunpack.c.h.b16 %v2163
      %v2196 = vunpack.c.l.b16 %v2164
      %v2197 = vunpack.c.l.b16 %v2165
      %v2198 = vunpack.c.h.b16 %v2164
      %v2199 = vunpack.c.h.b16 %v2165
      %v2200 = vunpack.c.l.b16 %v2166
      %v2201 = vunpack.c.l.b16 %v2167
      %v2202 = vunpack.c.h.b16 %v2166
      %v2203 = vunpack.c.h.b16 %v2167
      %v2204 = vpack.c.b16 %v2181, %v2180
      %v2205 = vpack.c.b16 %v2183, %v2182
      %v2206 = vpack.c.b16 %v2185, %v2184
      %v2207 = vpack.c.b16 %v2187, %v2186
      %v2208 = vpack.c.b16 %v2189, %v2188
      %v2209 = vpack.c.b16 %v2191, %v2190
      %v2210 = vpack.c.b16 %v2193, %v2192
      %v2211 = vpack.c.b16 %v2195, %v2194
      %v2212 = vpack.c.b16 %v2197, %v2196
      %v2213 = vpack.c.b16 %v2199, %v2198
      %v2214 = vpack.c.b16 %v2201, %v2200
      %v2215 = vpack.c.b16 %v2203, %v2202
      %2228 = vst [vmem:[%s265] sm:$0xff] %v2204
      %2229 = vst [vmem:[%s265 + $0x8] sm:$0xff] %v2205
      %2230 = vst [vmem:[%s265 + $0x10] sm:$0xff] %v2206
      %2231 = vst [vmem:[%s265 + $0x18] sm:$0xff] %v2207
      %2232 = vst [vmem:[%s265 + $0x20] sm:$0xff] %v2208
      %2233 = vst [vmem:[%s265 + $0x28] sm:$0xff] %v2209
      %2234 = vst [vmem:[%s265 + $0x30] sm:$0xff] %v2210
      %2235 = vst [vmem:[%s265 + $0x38] sm:$0xff] %v2211
      %2236 = vst [vmem:[%s265 + $0x40] sm:$0xff] %v2212
      %2237 = vst [vmem:[%s265 + $0x48] sm:$0xff] %v2213
      %2238 = vst [vmem:[%s265 + $0x50] sm:$0xff] %v2214
      %2239 = vst [vmem:[%s265 + $0x58] sm:$0xff] %v2215
      %s2240 = smul.u32 12, %s20
      %p2241 = scmp.lt.s32.totalorder %s19, 1
      %s2242 = scalar_select %p2241, %s19, 1
      %p2243 = scmp.lt.s32.totalorder %s2240, 11
      %s2244 = scalar_select %p2243, %s2240, 11
      %s2245 = smul.addr %s2244, 2
      %s2246 = smul.addr %s2242, 24
      %s2247 = sadd.s32 %s2245, %s2246
      %s2248 = smul.addr %s2247, 4
      %s2249 = scalar_lea.vmem %s4, %s2248
      // Predicated region
      $region37: #{mha_forward.2} parent=35 // pred_check
        %p2250 = pneg %p146
      $region38: #{mha_forward.2} parent=35 // pred_check_branch
        %2252 = sbr.rel (%p2250) target = $region40
      $region39: #{mha_forward.2} parent=35 // pred_region
        %s2253 = smul.u32 12, %s20
      $region40: #{mha_forward.2} parent=35 // pred_fallthru
        _
    $region36: #{mha_forward.2} parent=5 // pred_fallthru
      _
    %p2254 = scmp.le.s32.totalorder 2, %s10
    // Predicated region
    $region41: #{mha_forward.2} parent=5 // pred_check
      %p2255 = pneg %p2254
    $region42: #{mha_forward.2} parent=5 // pred_check_branch
      %2257 = sbr.rel (%p2255) target = $region44
    $region43: #{mha_forward.2} parent=5 // pred_region
      %s2258 = ssub.s32 %s10, 2
      // Predicated region
      $region45: #{mha_forward.2} parent=43 // pred_check
        %p2259 = pneg %p152
      $region46: #{mha_forward.2} parent=43 // pred_check_branch
        %2261 = sbr.rel (%p2259) target = $region48
      $region47: #{mha_forward.2} parent=43 // pred_region
        %s2262 = smul.u32 12, %s22
        %p2263 = scmp.lt.s32.totalorder %s21, 1
        %s2264 = scalar_select %p2263, %s21, 1
        %p2265 = scmp.lt.s32.totalorder %s2262, 11
        %s2266 = scalar_select %p2265, %s2262, 11
        %s2267 = smul.addr %s2266, 2
        %s2268 = smul.addr %s2264, 24
        %s2269 = sadd.s32 %s2267, %s2268
        %s2270 = smul.addr %s2269, 4
        %s2271 = scalar_lea.vmem %s4, %s2270
      $region48: #{mha_forward.2} parent=43 // pred_fallthru
        _
    $region44: #{mha_forward.2} parent=5 // pred_fallthru
      _
  $region6: #{mha_forward.2} parent=0 // loop_footer
    %s14 = sadd.s32 1, %s10
  $region7: #{mha_forward.2} parent=0 // loop_footer_branch
    %9 = sbr.rel target = $region3
  $region8: #{mha_forward.2} parent=0 // loop_exit
    _

</llo_original>
